<compile_context>
chip_gen: v7x
topology: tpu7x:2x2x1
jax: 0.10.0
libtpu: 0.0.40
codegen_flags: <defaults>
</compile_context>

<pallas_src>
import functools

import jax
import jax.numpy as jnp
from jax.experimental import pallas as pl
from jax.experimental.pallas import tpu as pltpu


# ----------------------------- Pallas kernel -------------------------------

def _fused_conv_kernel(x_ref, w_ref, b_ref, o_ref, *, kh, kw, dil, wp, l_ext,
                       apply_relu):
    """Fused zero-pad conv for one image (stride 1), flat 'wrap' formulation.

    x_ref: (1, C_in, Lp)         flattened padded image, compute dtype (bf16)
    w_ref: (KH*KW, C_out, C_in)  per-tap weight slices, compute dtype
    b_ref: (C_out, 1)            f32 bias column
    o_ref: (1, C_out, L_ext)     extended conv output (L_ext = Ho*Wp), final dtype
    """
    acc = None
    for i in range(kh):
        for j in range(kw):
            off = (i * dil) * wp + j * dil              # static flat tap offset
            x_tap = x_ref[0, :, pl.ds(off, l_ext)]      # (C_in, L_ext), lane shift
            w_tap = w_ref[i * kw + j]                   # (C_out, C_in)
            d = jnp.dot(w_tap, x_tap, preferred_element_type=jnp.float32)
            acc = d if acc is None else acc + d
    acc = acc + b_ref[...]                              # f32 epilogue (v5e-safe)
    if apply_relu:
        acc = jnp.maximum(acc, 0.0)
    o_ref[0] = acc.astype(o_ref.dtype)                  # single cast at store


# ------------------------------ wrapper -------------------------------------

def upsample_block_forward(x, weight, bias, *, kernel_size, stride=1,
                           padding=0, dilation=1, apply_relu=True,
                           compute_dtype=jnp.bfloat16):
    """x: (N, C_in, H, W) NCHW, weight: (C_out, C_in, KH, KW), bias: (C_out,).

    compute_dtype: MXU operand dtype (default bf16 -- halves the dominant HBM
    stream; accumulation + bias + ReLU stay f32). Pass jnp.float32 for an
    exact path.
    """
    n, c_in, h, w = x.shape
    c_out = weight.shape[0]
    kh = kw = kernel_size
    r = 2  # the module hardcodes PixelShuffle(2)

    assert stride == 1, "TODO(synk): stride > 1 not implemented"
    assert weight.shape[1] == c_in, "TODO(synk): groups > 1 not implemented"
    assert c_out % (r * r) == 0, "C_out must be divisible by 4 for PixelShuffle(2)"

    # ZeroPad2d
    if padding > 0:
        x_p = jnp.pad(x, ((0, 0), (0, 0), (padding, padding), (padding, padding)))
    else:
        x_p = x
    hp, wp = h + 2 * padding, w + 2 * padding
    ho = hp - dilation * (kh - 1)
    wo = wp - dilation * (kw - 1)
    assert ho > 0 and wo > 0, "kernel larger than padded input"

    l_ext = ho * wp                   # extended ('wrap') output length per image
    tail = dilation * (kw - 1)        # flat tail so every tap slice stays in-bounds
    lp = hp * wp + tail

    # Flatten per channel (free reshape), tiny tail pad, cast to compute dtype
    # BEFORE the call so the HBM stream into the kernel is already bf16.
    x_flat = x_p.reshape(n, c_in, hp * wp)
    if tail > 0:
        x_flat = jnp.pad(x_flat, ((0, 0), (0, 0), (0, tail)))
    x_flat = x_flat.astype(compute_dtype)

    # Per-tap weight slices: (KH*KW, C_out, C_in); bias as f32 column.
    w_taps = jnp.transpose(weight, (2, 3, 0, 1)).reshape(kh * kw, c_out, c_in)
    w_taps = w_taps.astype(compute_dtype)
    b_col = bias.reshape(c_out, 1).astype(jnp.float32)

    kernel = functools.partial(_fused_conv_kernel, kh=kh, kw=kw, dil=dilation,
                               wp=wp, l_ext=l_ext, apply_relu=apply_relu)
    conv_e = pl.pallas_call(
        kernel,
        # Emit in the final dtype so the post-kernel shuffle transpose moves
        # the minimum number of bytes (review "Option B").
        out_shape=jax.ShapeDtypeStruct((n, c_out, l_ext), x.dtype),
        grid_spec=pltpu.PrefetchScalarGridSpec(
            num_scalar_prefetch=0,
            grid=(n,),
            in_specs=[
                pl.BlockSpec((1, c_in, lp), lambda b: (b, 0, 0)),        # image
                pl.BlockSpec((kh * kw, c_out, c_in), lambda b: (0, 0, 0)),  # weights
                pl.BlockSpec((c_out, 1), lambda b: (0, 0)),              # bias
            ],
            out_specs=pl.BlockSpec((1, c_out, l_ext), lambda b: (b, 0, 0)),
        ),
        compiler_params=pltpu.CompilerParams(
            dimension_semantics=("parallel",)),
    )(x_flat, w_taps, b_col)

    # Drop the wrap columns (free reshape + slice), then PixelShuffle(2) as a
    # single reshape/transpose/reshape on the final-dtype output.
    conv = conv_e.reshape(n, c_out, ho, wp)[:, :, :, :wo]      # (N, C_out, Ho, Wo)
    out = conv.reshape(n, c_out // (r * r), r, r, ho, wo)
    out = jnp.transpose(out, (0, 1, 4, 2, 5, 3))               # (N, C4, Ho, r, Wo, r)
    return out.reshape(n, c_out // (r * r), ho * r, wo * r)


# ------------------------------ reference -----------------------------------

def _pixel_shuffle(x_nchw, r=2):
    n, c, h, w = x_nchw.shape
    x = x_nchw.reshape(n, c // (r * r), r, r, h, w)
    x = jnp.transpose(x, (0, 1, 4, 2, 5, 3))
    return x.reshape(n, c // (r * r), h * r, w * r)


def _reference_forward(x, weight, bias, *, kernel_size, stride, padding, dilation):
    xp = jnp.pad(x, ((0, 0), (0, 0), (padding, padding), (padding, padding)))
    conv = jax.lax.conv_general_dilated(
        xp, weight, window_strides=(stride, stride), padding="VALID",
        rhs_dilation=(dilation, dilation),
        dimension_numbers=("NCHW", "OIHW", "NCHW"))
    conv = conv + bias.reshape(1, -1, 1, 1)
    ps = _pixel_shuffle(conv, r=2)
    return jnp.maximum(ps, 0.0)


# -------------------------------- main ---------------------------------------

if __name__ == "__main__":
    # UpsampleBLock(in_channels=4, out_channels=16, kernel_size=3, up_scale=2,
    #               act_func=nn.ReLU(), padding=1)
    N, C_in, H, W = 2, 4, 16, 16
    C_out, KSIZE, STRIDE, PAD, DIL = 16, 3, 1, 1, 1

    key = jax.random.PRNGKey(0)
    kx, kw_, kb = jax.random.split(key, 3)
    x = jax.random.normal(kx, (N, C_in, H, W), dtype=jnp.float32)
    fan_in = C_in * KSIZE * KSIZE
    weight = jax.random.normal(kw_, (C_out, C_in, KSIZE, KSIZE),
                               dtype=jnp.float32) * (1.0 / jnp.sqrt(fan_in))
    bias = jax.random.normal(kb, (C_out,), dtype=jnp.float32) * 0.1

    ref = _reference_forward(x, weight, bias, kernel_size=KSIZE, stride=STRIDE,
                             padding=PAD, dilation=DIL)

    # 1) Default path: bf16 MXU operands, f32 accumulation/epilogue, fused
    #    in-kernel im2col. Loose tolerance for operand quantization only.
    out_bf = upsample_block_forward(x, weight, bias, kernel_size=KSIZE,
                                    stride=STRIDE, padding=PAD, dilation=DIL,
                                    apply_relu=True)
    out_bf = jax.block_until_ready(out_bf)
    assert out_bf.shape == (N, C_out // 4, H * 2, W * 2), out_bf.shape
    assert jnp.allclose(out_bf, ref, atol=5e-2, rtol=5e-2), "bf16 mismatch vs reference"

    # 2) Exact f32-operand path vs reference (tight tolerance).
    out_f32 = upsample_block_forward(x, weight, bias, kernel_size=KSIZE,
                                     stride=STRIDE, padding=PAD, dilation=DIL,
                                     apply_relu=True, compute_dtype=jnp.float32)
    out_f32 = jax.block_until_ready(out_f32)
    assert jnp.allclose(out_f32, ref, atol=1e-4, rtol=1e-4), "f32 mismatch vs reference"

    # 3) Non-lane-friendly spatial size (odd Wo -> wrap columns + masked
    #    stores exercised), single grid step.
    x2 = jax.random.normal(key, (1, C_in, 7, 7), dtype=jnp.float32)
    out2 = upsample_block_forward(x2, weight, bias, kernel_size=KSIZE,
                                  stride=STRIDE, padding=PAD, dilation=DIL,
                                  apply_relu=True, compute_dtype=jnp.float32)
    out2 = jax.block_until_ready(out2)
    ref2 = _reference_forward(x2, weight, bias, kernel_size=KSIZE, stride=STRIDE,
                              padding=PAD, dilation=DIL)
    assert out2.shape == (1, C_out // 4, 14, 14), out2.shape
    assert jnp.allclose(out2, ref2, atol=1e-4, rtol=1e-4), "odd-size mismatch"

    print("KERNEL_OK")
</pallas_src>

<mosaic_0001>
module attributes {stable_mosaic.version = 11 : i64} {
  func.func @_fused_conv_kernel(%arg0: i32, %arg1: memref<1x4x326xbf16, #tpu.memory_space<vmem>>, %arg2: memref<9x16x4xbf16, #tpu.memory_space<vmem>>, %arg3: memref<16x1xf32, #tpu.memory_space<vmem>>, %arg4: memref<1x16x288xf32, #tpu.memory_space<vmem>>) attributes {dimension_semantics = [#tpu.dimension_semantics<parallel>], iteration_bounds = array<i64: 2>, scalar_prefetch = 0 : i64, scratch_operands = 0 : i64, tpu.core_type = #tpu.core_type<tc>, window_params = [{transform_indices = @transform_0, window_bounds = array<i64: 1, 4, 326>}, {pipeline_mode = #tpu.pipeline_mode<synchronous>, transform_indices = @transform_1, window_bounds = array<i64: 9, 16, 4>}, {pipeline_mode = #tpu.pipeline_mode<synchronous>, transform_indices = @transform_2, window_bounds = array<i64: 16, 1>}, {transform_indices = @transform_3, window_bounds = array<i64: 1, 16, 288>}]} {
    %c0 = arith.constant 0 : index
    %c0_0 = arith.constant 0 : index
    %c0_1 = arith.constant 0 : index
    %0 = vector.load %arg1[%c0, %c0_0, %c0_1] : memref<1x4x326xbf16, #tpu.memory_space<vmem>>, vector<1x4x288xbf16>
    %1 = vector.shape_cast %0 : vector<1x4x288xbf16> to vector<4x288xbf16>
    %c0_2 = arith.constant 0 : index
    %c0_3 = arith.constant 0 : index
    %c0_4 = arith.constant 0 : index
    %2 = vector.load %arg2[%c0_2, %c0_3, %c0_4] : memref<9x16x4xbf16, #tpu.memory_space<vmem>>, vector<1x16x4xbf16>
    %3 = vector.shape_cast %2 : vector<1x16x4xbf16> to vector<16x4xbf16>
    %cst = arith.constant dense<0.000000e+00> : vector<16x288xf32>
    %4 = tpu.matmul %3, %1, %cst {dimension_numbers = #tpu.dot_dimension_numbers<[1], [0], [0], [1], [0, 0, 1, 1], [], []>} : vector<16x4xbf16>, vector<4x288xbf16>, vector<16x288xf32> -> vector<16x288xf32>
    %c0_5 = arith.constant 0 : index
    %c0_6 = arith.constant 0 : index
    %c1 = arith.constant 1 : index
    %5 = vector.load %arg1[%c0_5, %c0_6, %c1] : memref<1x4x326xbf16, #tpu.memory_space<vmem>>, vector<1x4x288xbf16>
    %6 = vector.shape_cast %5 : vector<1x4x288xbf16> to vector<4x288xbf16>
    %c1_7 = arith.constant 1 : index
    %c0_8 = arith.constant 0 : index
    %c0_9 = arith.constant 0 : index
    %7 = vector.load %arg2[%c1_7, %c0_8, %c0_9] : memref<9x16x4xbf16, #tpu.memory_space<vmem>>, vector<1x16x4xbf16>
    %8 = vector.shape_cast %7 : vector<1x16x4xbf16> to vector<16x4xbf16>
    %cst_10 = arith.constant dense<0.000000e+00> : vector<16x288xf32>
    %9 = tpu.matmul %8, %6, %cst_10 {dimension_numbers = #tpu.dot_dimension_numbers<[1], [0], [0], [1], [0, 0, 1, 1], [], []>} : vector<16x4xbf16>, vector<4x288xbf16>, vector<16x288xf32> -> vector<16x288xf32>
    %10 = arith.addf %4, %9 : vector<16x288xf32>
    %c0_11 = arith.constant 0 : index
    %c0_12 = arith.constant 0 : index
    %c2 = arith.constant 2 : index
    %11 = vector.load %arg1[%c0_11, %c0_12, %c2] : memref<1x4x326xbf16, #tpu.memory_space<vmem>>, vector<1x4x288xbf16>
    %12 = vector.shape_cast %11 : vector<1x4x288xbf16> to vector<4x288xbf16>
    %c2_13 = arith.constant 2 : index
    %c0_14 = arith.constant 0 : index
    %c0_15 = arith.constant 0 : index
    %13 = vector.load %arg2[%c2_13, %c0_14, %c0_15] : memref<9x16x4xbf16, #tpu.memory_space<vmem>>, vector<1x16x4xbf16>
    %14 = vector.shape_cast %13 : vector<1x16x4xbf16> to vector<16x4xbf16>
    %cst_16 = arith.constant dense<0.000000e+00> : vector<16x288xf32>
    %15 = tpu.matmul %14, %12, %cst_16 {dimension_numbers = #tpu.dot_dimension_numbers<[1], [0], [0], [1], [0, 0, 1, 1], [], []>} : vector<16x4xbf16>, vector<4x288xbf16>, vector<16x288xf32> -> vector<16x288xf32>
    %16 = arith.addf %10, %15 : vector<16x288xf32>
    %c0_17 = arith.constant 0 : index
    %c0_18 = arith.constant 0 : index
    %c18 = arith.constant 18 : index
    %17 = vector.load %arg1[%c0_17, %c0_18, %c18] : memref<1x4x326xbf16, #tpu.memory_space<vmem>>, vector<1x4x288xbf16>
    %18 = vector.shape_cast %17 : vector<1x4x288xbf16> to vector<4x288xbf16>
    %c3 = arith.constant 3 : index
    %c0_19 = arith.constant 0 : index
    %c0_20 = arith.constant 0 : index
    %19 = vector.load %arg2[%c3, %c0_19, %c0_20] : memref<9x16x4xbf16, #tpu.memory_space<vmem>>, vector<1x16x4xbf16>
    %20 = vector.shape_cast %19 : vector<1x16x4xbf16> to vector<16x4xbf16>
    %cst_21 = arith.constant dense<0.000000e+00> : vector<16x288xf32>
    %21 = tpu.matmul %20, %18, %cst_21 {dimension_numbers = #tpu.dot_dimension_numbers<[1], [0], [0], [1], [0, 0, 1, 1], [], []>} : vector<16x4xbf16>, vector<4x288xbf16>, vector<16x288xf32> -> vector<16x288xf32>
    %22 = arith.addf %16, %21 : vector<16x288xf32>
    %c0_22 = arith.constant 0 : index
    %c0_23 = arith.constant 0 : index
    %c19 = arith.constant 19 : index
    %23 = vector.load %arg1[%c0_22, %c0_23, %c19] : memref<1x4x326xbf16, #tpu.memory_space<vmem>>, vector<1x4x288xbf16>
    %24 = vector.shape_cast %23 : vector<1x4x288xbf16> to vector<4x288xbf16>
    %c4 = arith.constant 4 : index
    %c0_24 = arith.constant 0 : index
    %c0_25 = arith.constant 0 : index
    %25 = vector.load %arg2[%c4, %c0_24, %c0_25] : memref<9x16x4xbf16, #tpu.memory_space<vmem>>, vector<1x16x4xbf16>
    %26 = vector.shape_cast %25 : vector<1x16x4xbf16> to vector<16x4xbf16>
    %cst_26 = arith.constant dense<0.000000e+00> : vector<16x288xf32>
    %27 = tpu.matmul %26, %24, %cst_26 {dimension_numbers = #tpu.dot_dimension_numbers<[1], [0], [0], [1], [0, 0, 1, 1], [], []>} : vector<16x4xbf16>, vector<4x288xbf16>, vector<16x288xf32> -> vector<16x288xf32>
    %28 = arith.addf %22, %27 : vector<16x288xf32>
    %c0_27 = arith.constant 0 : index
    %c0_28 = arith.constant 0 : index
    %c20 = arith.constant 20 : index
    %29 = vector.load %arg1[%c0_27, %c0_28, %c20] : memref<1x4x326xbf16, #tpu.memory_space<vmem>>, vector<1x4x288xbf16>
    %30 = vector.shape_cast %29 : vector<1x4x288xbf16> to vector<4x288xbf16>
    %c5 = arith.constant 5 : index
    %c0_29 = arith.constant 0 : index
    %c0_30 = arith.constant 0 : index
    %31 = vector.load %arg2[%c5, %c0_29, %c0_30] : memref<9x16x4xbf16, #tpu.memory_space<vmem>>, vector<1x16x4xbf16>
    %32 = vector.shape_cast %31 : vector<1x16x4xbf16> to vector<16x4xbf16>
    %cst_31 = arith.constant dense<0.000000e+00> : vector<16x288xf32>
    %33 = tpu.matmul %32, %30, %cst_31 {dimension_numbers = #tpu.dot_dimension_numbers<[1], [0], [0], [1], [0, 0, 1, 1], [], []>} : vector<16x4xbf16>, vector<4x288xbf16>, vector<16x288xf32> -> vector<16x288xf32>
    %34 = arith.addf %28, %33 : vector<16x288xf32>
    %c0_32 = arith.constant 0 : index
    %c0_33 = arith.constant 0 : index
    %c36 = arith.constant 36 : index
    %35 = vector.load %arg1[%c0_32, %c0_33, %c36] : memref<1x4x326xbf16, #tpu.memory_space<vmem>>, vector<1x4x288xbf16>
    %36 = vector.shape_cast %35 : vector<1x4x288xbf16> to vector<4x288xbf16>
    %c6 = arith.constant 6 : index
    %c0_34 = arith.constant 0 : index
    %c0_35 = arith.constant 0 : index
    %37 = vector.load %arg2[%c6, %c0_34, %c0_35] : memref<9x16x4xbf16, #tpu.memory_space<vmem>>, vector<1x16x4xbf16>
    %38 = vector.shape_cast %37 : vector<1x16x4xbf16> to vector<16x4xbf16>
    %cst_36 = arith.constant dense<0.000000e+00> : vector<16x288xf32>
    %39 = tpu.matmul %38, %36, %cst_36 {dimension_numbers = #tpu.dot_dimension_numbers<[1], [0], [0], [1], [0, 0, 1, 1], [], []>} : vector<16x4xbf16>, vector<4x288xbf16>, vector<16x288xf32> -> vector<16x288xf32>
    %40 = arith.addf %34, %39 : vector<16x288xf32>
    %c0_37 = arith.constant 0 : index
    %c0_38 = arith.constant 0 : index
    %c37 = arith.constant 37 : index
    %41 = vector.load %arg1[%c0_37, %c0_38, %c37] : memref<1x4x326xbf16, #tpu.memory_space<vmem>>, vector<1x4x288xbf16>
    %42 = vector.shape_cast %41 : vector<1x4x288xbf16> to vector<4x288xbf16>
    %c7 = arith.constant 7 : index
    %c0_39 = arith.constant 0 : index
    %c0_40 = arith.constant 0 : index
    %43 = vector.load %arg2[%c7, %c0_39, %c0_40] : memref<9x16x4xbf16, #tpu.memory_space<vmem>>, vector<1x16x4xbf16>
    %44 = vector.shape_cast %43 : vector<1x16x4xbf16> to vector<16x4xbf16>
    %cst_41 = arith.constant dense<0.000000e+00> : vector<16x288xf32>
    %45 = tpu.matmul %44, %42, %cst_41 {dimension_numbers = #tpu.dot_dimension_numbers<[1], [0], [0], [1], [0, 0, 1, 1], [], []>} : vector<16x4xbf16>, vector<4x288xbf16>, vector<16x288xf32> -> vector<16x288xf32>
    %46 = arith.addf %40, %45 : vector<16x288xf32>
    %c0_42 = arith.constant 0 : index
    %c0_43 = arith.constant 0 : index
    %c38 = arith.constant 38 : index
    %47 = vector.load %arg1[%c0_42, %c0_43, %c38] : memref<1x4x326xbf16, #tpu.memory_space<vmem>>, vector<1x4x288xbf16>
    %48 = vector.shape_cast %47 : vector<1x4x288xbf16> to vector<4x288xbf16>
    %c8 = arith.constant 8 : index
    %c0_44 = arith.constant 0 : index
    %c0_45 = arith.constant 0 : index
    %49 = vector.load %arg2[%c8, %c0_44, %c0_45] : memref<9x16x4xbf16, #tpu.memory_space<vmem>>, vector<1x16x4xbf16>
    %50 = vector.shape_cast %49 : vector<1x16x4xbf16> to vector<16x4xbf16>
    %cst_46 = arith.constant dense<0.000000e+00> : vector<16x288xf32>
    %51 = tpu.matmul %50, %48, %cst_46 {dimension_numbers = #tpu.dot_dimension_numbers<[1], [0], [0], [1], [0, 0, 1, 1], [], []>} : vector<16x4xbf16>, vector<4x288xbf16>, vector<16x288xf32> -> vector<16x288xf32>
    %52 = arith.addf %46, %51 : vector<16x288xf32>
    %c0_47 = arith.constant 0 : index
    %c0_48 = arith.constant 0 : index
    %53 = vector.load %arg3[%c0_47, %c0_48] : memref<16x1xf32, #tpu.memory_space<vmem>>, vector<16x1xf32>
    %54 = vector.broadcast %53 : vector<16x1xf32> to vector<16x288xf32>
    %55 = arith.addf %52, %54 : vector<16x288xf32>
    %cst_49 = arith.constant 0.000000e+00 : f32
    %56 = vector.broadcast %cst_49 : f32 to vector<16x288xf32>
    %57 = arith.maximumf %55, %56 : vector<16x288xf32>
    %c0_50 = arith.constant 0 : index
    %c0_51 = arith.constant 0 : index
    %c0_52 = arith.constant 0 : index
    %58 = vector.load %arg4[%c0_50, %c0_51, %c0_52] : memref<1x16x288xf32, #tpu.memory_space<vmem>>, vector<1x16x288xf32>
    %59 = vector.shape_cast %58 : vector<1x16x288xf32> to vector<16x288xf32>
    %60 = vector.shape_cast %57 : vector<16x288xf32> to vector<1x16x288xf32>
    tpu.vector_store %arg4[%c0_50, %c0_51, %c0_52], %60 {strides = array<i32>} : memref<1x16x288xf32, #tpu.memory_space<vmem>>, vector<1x16x288xf32>,
    return
  }
  func.func @transform_0(%arg0: i32) -> (i32, i32, i32) {
    %c0_i32 = arith.constant 0 : i32
    %c0_i32_0 = arith.constant 0 : i32
    %c0_i32_1 = arith.constant 0 : i32
    return %arg0, %c0_i32, %c0_i32_0 : i32, i32, i32
  }
  func.func @transform_1(%arg0: i32) -> (i32, i32, i32) {
    %c0_i32 = arith.constant 0 : i32
    %c0_i32_0 = arith.constant 0 : i32
    %c0_i32_1 = arith.constant 0 : i32
    %c0_i32_2 = arith.constant 0 : i32
    return %c0_i32, %c0_i32_0, %c0_i32_1 : i32, i32, i32
  }
  func.func @transform_2(%arg0: i32) -> (i32, i32) {
    %c0_i32 = arith.constant 0 : i32
    %c0_i32_0 = arith.constant 0 : i32
    %c0_i32_1 = arith.constant 0 : i32
    return %c0_i32, %c0_i32_0 : i32, i32
  }
  func.func @transform_3(%arg0: i32) -> (i32, i32, i32) {
    %c0_i32 = arith.constant 0 : i32
    %c0_i32_0 = arith.constant 0 : i32
    %c0_i32_1 = arith.constant 0 : i32
    return %arg0, %c0_i32, %c0_i32_0 : i32, i32, i32
  }
}

</mosaic_0001>

<llo_original>
// kernel: tpu_custom_call.1
$region0: #{tpu_custom_call.1}
  #allocation0 [shape = 'u32[]', space=smem, size = 0x4, offset = 0x4, fixed_abs, tag = 'smem constant byte address 0x4 - core index']
  #allocation1 [shape = 'u32[144,128]{1,0:T(1,128)}', space=vmem, size = 0x12000, scoped, tag = 'internal scratch']
  %s0 = inlined_call_operand.vmem [shape: bf16[2,4,326], index: 0, kind: input, shape index: {}]
  %s1 = inlined_call_operand.vmem [shape: bf16[9,16,4], index: 1, kind: input, shape index: {}]
  %s2 = inlined_call_operand.vmem [shape: f32[16,1], index: 2, kind: input, shape index: {}]
  %s3 = inlined_call_operand.hbm [shape: f32[2,16,288], index: 3, kind: output, shape index: {}]
  %s4 = sld [smem:[#allocation0]]
  $region45: #{tpu_custom_call.1} parent=0
    _
  %s6 = ssub.s32 1, %s4
  %s7 = scalar_select 0, %s6, %s4
  $region1: #{tpu_custom_call.1} parent=0
    #allocation2 [shape = 'u8[49152]{0}', space=vmem, size = 0xc000, scoped, tag = 'output window, operand 0']
    #allocation3 [shape = 's32[2]{0}', space=sflag, size = 0x8, scoped, tag = 'scoped memory for tpu_custom_call.1']
    %8 = vsyncpa [#allocation3], 0
    %s9 = scalar_lea.sflag [#allocation3], 1
    %10 = vsyncpa %s9, 0
    loop: start=0, step=1, limit=4
    $region2: #{tpu_custom_call.1} parent=1 // loop_pre_header
      _
    $region3: #{tpu_custom_call.1} parent=1 // loop_header
      %s12 = sphi 0, %s16
      %p13 = scmp.ge.s32.totalorder %s12, 4
      %s22 = sphi 0, %s24
      %s25 = sphi 0, %s22
      %s26 = sphi 0, %s25
      %s42 = sphi 0, %s26
      %s46 = sphi 0, %s46
      %s48 = sphi 0, %s46
      %s49 = sphi 0, %s48
      %s63 = sphi 0, %s49
      %s67 = sphi 0, %s67
      %s69 = sphi 0, %s67
      %s70 = sphi 0, %s69
      %s84 = sphi 0, %s70
      %s90 = sphi 0, %s92
      %s93 = sphi 0, %s90
      %s94 = sphi 0, %s93
      %s110 = sphi 0, %s94
    $region4: #{tpu_custom_call.1} parent=1 // loop_header_branch
      %15 = sbr.rel (%p13) target = $region8
    $region5: #{tpu_custom_call.1} parent=1 // loop_body
      %s17 = ssub.s32 %s12, 1
      %s18 = ssub.s32 %s12, 2
      %s19 = sadd.s32 %s12, 1
      %s20 = ssub.s32 %s12, %s19
      %p21 = scmp.eq.s32.totalorder %s20, 0
      %s23 = sadd.s32 %s22, 1
      %s24 = scalar_select %p21, %s22, %s23
      %p27 = pneg %p21
      %p28 = scmp.eq.s32.totalorder %s12, 1
      %p29 = por %p27, %p28
      %p30 = scmp.ne.s32.totalorder %s22, %s25
      %p31 = scmp.eq.s32.totalorder %s12, 0
      %p32 = por %p30, %p31
      %p33 = scmp.ne.s32.totalorder %s22, %s25
      %p34 = scmp.eq.s32.totalorder %s17, 1
      %p35 = por %p33, %p34
      %p36 = scmp.ne.s32.totalorder %s25, %s26
      %p37 = scmp.eq.s32.totalorder %s17, 0
      %p38 = por %p36, %p37
      %p39 = scmp.ne.s32.totalorder %s25, %s26
      %p40 = scmp.eq.s32.totalorder %s18, 1
      %p41 = por %p39, %p40
      %p43 = scmp.ne.s32.totalorder %s26, %s42
      %p44 = scmp.eq.s32.totalorder %s18, 0
      %p45 = por %p43, %p44
      %s47 = sadd.s32 %s46, 1
      %p50 = scmp.eq.s32.totalorder %s12, 1
      %p51 = scmp.ne.s32.totalorder %s46, %s48
      %p52 = scmp.eq.s32.totalorder %s12, 0
      %p53 = por %p51, %p52
      %p54 = scmp.ne.s32.totalorder %s46, %s48
      %p55 = scmp.eq.s32.totalorder %s17, 1
      %p56 = por %p54, %p55
      %p57 = scmp.ne.s32.totalorder %s48, %s49
      %p58 = scmp.eq.s32.totalorder %s17, 0
      %p59 = por %p57, %p58
      %p60 = scmp.ne.s32.totalorder %s48, %s49
      %p61 = scmp.eq.s32.totalorder %s18, 1
      %p62 = por %p60, %p61
      %p64 = scmp.ne.s32.totalorder %s49, %s63
      %p65 = scmp.eq.s32.totalorder %s18, 0
      %p66 = por %p64, %p65
      %s68 = sadd.s32 %s67, 1
      %p71 = scmp.eq.s32.totalorder %s12, 1
      %p72 = scmp.ne.s32.totalorder %s67, %s69
      %p73 = scmp.eq.s32.totalorder %s12, 0
      %p74 = por %p72, %p73
      %p75 = scmp.ne.s32.totalorder %s67, %s69
      %p76 = scmp.eq.s32.totalorder %s17, 1
      %p77 = por %p75, %p76
      %p78 = scmp.ne.s32.totalorder %s69, %s70
      %p79 = scmp.eq.s32.totalorder %s17, 0
      %p80 = por %p78, %p79
      %p81 = scmp.ne.s32.totalorder %s69, %s70
      %p82 = scmp.eq.s32.totalorder %s18, 1
      %p83 = por %p81, %p82
      %p85 = scmp.ne.s32.totalorder %s70, %s84
      %p86 = scmp.eq.s32.totalorder %s18, 0
      %p87 = por %p85, %p86
      %s88 = ssub.s32 %s12, %s19
      %p89 = scmp.eq.s32.totalorder %s88, 0
      %s91 = sadd.s32 %s90, 1
      %s92 = scalar_select %p89, %s90, %s91
      %p95 = pneg %p89
      %p96 = scmp.eq.s32.totalorder %s12, 1
      %p97 = por %p95, %p96
      %p98 = scmp.ne.s32.totalorder %s90, %s93
      %p99 = scmp.eq.s32.totalorder %s12, 0
      %p100 = por %p98, %p99
      %p101 = scmp.ne.s32.totalorder %s90, %s93
      %p102 = scmp.eq.s32.totalorder %s17, 1
      %p103 = por %p101, %p102
      %p104 = scmp.ne.s32.totalorder %s93, %s94
      %p105 = scmp.eq.s32.totalorder %s17, 0
      %p106 = por %p104, %p105
      %p107 = scmp.ne.s32.totalorder %s93, %s94
      %p108 = scmp.eq.s32.totalorder %s18, 1
      %p109 = por %p107, %p108
      %p111 = scmp.ne.s32.totalorder %s94, %s110
      %p112 = scmp.eq.s32.totalorder %s18, 0
      %p113 = por %p111, %p112
      %p114 = scmp.le.s32.totalorder 1, %s12
      %p115 = scmp.lt.s32.totalorder %s12, 3
      %p116 = pnand %p114, %p115
      %p117 = pneg %p116
      // Predicated region
      $region9: #{tpu_custom_call.1} parent=5 // pred_check
        _
      $region10: #{tpu_custom_call.1} parent=5 // pred_check_branch
        %119 = sbr.rel (%p116) target = $region12
      $region11: #{tpu_custom_call.1} parent=5 // pred_region
        %s120 = ssub.s32 %s12, 1
        // Predicated region
        $region13: #{tpu_custom_call.1} parent=11 // pred_check
          %p121 = pneg %p59
        $region14: #{tpu_custom_call.1} parent=11 // pred_check_branch
          %123 = sbr.rel (%p121) target = $region16
        $region15: #{tpu_custom_call.1} parent=11 // pred_region
          _
        $region16: #{tpu_custom_call.1} parent=11 // pred_fallthru
          _
        // Predicated region
        $region17: #{tpu_custom_call.1} parent=11 // pred_check
          %p124 = pneg %p80
        $region18: #{tpu_custom_call.1} parent=11 // pred_check_branch
          %126 = sbr.rel (%p124) target = $region20
        $region19: #{tpu_custom_call.1} parent=11 // pred_region
          _
        $region20: #{tpu_custom_call.1} parent=11 // pred_fallthru
          _
      $region12: #{tpu_custom_call.1} parent=5 // pred_fallthru
        _
      %p127 = scmp.lt.s32.totalorder %s12, 2
      // Predicated region
      $region21: #{tpu_custom_call.1} parent=5 // pred_check
        %p128 = pneg %p127
      $region22: #{tpu_custom_call.1} parent=5 // pred_check_branch
        %130 = sbr.rel (%p128) target = $region24
      $region23: #{tpu_custom_call.1} parent=5 // pred_region
        // Predicated region
        $region25: #{tpu_custom_call.1} parent=23 // pred_check
          %p131 = pneg %p32
        $region26: #{tpu_custom_call.1} parent=23 // pred_check_branch
          %133 = sbr.rel (%p131) target = $region28
        $region27: #{tpu_custom_call.1} parent=23 // pred_region
          %p134 = scmp.lt.s32.totalorder %s12, 1
          %s135 = scalar_select %p134, %s12, 1
          %s136 = smul.addr %s135, 3
          %s137 = smul.addr %s136, 2
          %s138 = scalar_lea.vmem %s0, %s137
        $region28: #{tpu_custom_call.1} parent=23 // pred_fallthru
          _
      $region24: #{tpu_custom_call.1} parent=5 // pred_fallthru
        _
      %p139 = scmp.le.s32.totalorder 1, %s12
      %p140 = scmp.lt.s32.totalorder %s12, 3
      %p141 = pnand %p139, %p140
      %p142 = pneg %p141
      // Predicated region
      $region29: #{tpu_custom_call.1} parent=5 // pred_check
        _
      $region30: #{tpu_custom_call.1} parent=5 // pred_check_branch
        %144 = sbr.rel (%p141) target = $region32
      $region31: #{tpu_custom_call.1} parent=5 // pred_region
        %s145 = ssub.s32 %s12, 1
        %p146 = scmp.lt.s32.totalorder %s17, 1
        %s147 = scalar_select %p146, %s17, 1
        %s148 = smul.addr %s147, 3
        %s149 = smul.addr %s148, 2
        %s150 = scalar_lea.vmem %s0, %s149
        %p151 = pneg %p38
        %p152 = pneg %p35
        %p153 = pneg %p59
        %p154 = pneg %p56
        %p155 = pneg %p80
        %p156 = pneg %p77
        %p157 = pneg %p106
        %p158 = pneg %p103
        %s159 = sand.u32 %s93, 1
        %s160 = scalar_lea.sflag [#allocation3], %s159
        %s161 = sand.u32 %s93, 1
        %s162 = smul.addr %s161, 48
        %s163 = scalar_lea.vmem [#allocation2], %s162
        %p164 = scmp.lt.s32.totalorder %s17, 1
        %s165 = scalar_select %p164, %s17, 1
        %s166 = smul.addr %s165, 3
        %s167 = smul.addr %s166, 2
        %s168 = scalar_lea.vmem %s0, %s167
        %v170 = vld [vmem:[%s168] sm:$0x3f]
        %v171 = vld [vmem:[%s1] sm:$0xf]
        %v172 = vld [vmem:[%s1 + $0x4] sm:$0xf]
        %s173 = scalar_lea.vmem %s1, 8
        %v174 = vld [vmem:[%s173] sm:$0xf]
        %v175 = vld [vmem:[%s173 + $0x4] sm:$0xf]
        %v178 = vunpack.c.l.b16 %v174
        %v179 = vunpack.c.l.b16 %v175
        %v180 = vpack.c.b16 %v179, %v178
        %v182 = vcombine.high %v170, %v170
        %v184 = vunpack.c.l.s4 1983009808
        %v185 = vunpack.c.0.s8 %v184
        %v186 = vlaneseq
        %v187 = vshrl.u32 %v186, 7
        %v188 = vsub.s32 %v185, %v187
        %v189 = vrot.slane %v170, %v188
        %v191 = vunpack.c.l.s4 1983009808
        %v192 = vunpack.c.0.s8 %v191
        %v193 = vlaneseq
        %v194 = vshrl.u32 %v193, 7
        %v195 = vsub.s32 %v192, %v194
        %v196 = vrot.slane %v182, %v195
        %v197 = vcombine.high %v189, %v189
        %198 = vrot.lane.b32.xlu0 %v189, 127
        %v199 = vpop.permute.xlu0 %198
        %200 = vrot.lane.b32.xlu0 %v197, 127
        %v201 = vpop.permute.xlu0 %200
        %202 = vrot.lane.b32.xlu0 %v196, 127
        %v203 = vpop.permute.xlu0 %202
        %vm204 = vcmask 1039360
        %v205 = vsel %vm204, %v199, %v201
        %v206 = vsel %vm204, %v201, %v203
        %vm207 = vcmask 31744
        %v209 = vsel %vm207, %v180, 0
        %vm211 = vcmask 1041408
        %v213 = vsel %vm211, %v205, 0
        %v216 = vsel %vm211, %v206, 0
        %v219 = vsel %vm211, %v203, 0
        %221 = vmatprep.subr.bf16.mxu0 %v216
        %222 = vmatpush1.bf16.msra.mxu0 %v213
        %223 = vmatprep.subr.bf16.mxu0 0
        %224 = vmatpush1.bf16.msra.mxu0 0
        %225 = vmatprep.subr.bf16.mxu0 0
        %226 = vmatpush1.bf16.msra.mxu0 0
        %227 = vmatprep.subr.bf16.mxu0 0
        %228 = vmatpush1.bf16.msra.mxu0 0
        %229 = vmatprep.subr.bf16.mxu0 0
        %230 = vmatpush1.bf16.msra.mxu0 0
        %231 = vmatprep.subr.bf16.mxu0 0
        %232 = vmatpush1.bf16.msra.mxu0 0
        %233 = vmatprep.subr.bf16.mxu0 0
        %234 = vmatpush1.bf16.msra.mxu0 0
        %235 = vmatprep.subr.bf16.mxu0 0
        %236 = vmatpush1.bf16.msra.mxu0 0
        %237 = vmatprep.subr.bf16.mxu0 0
        %238 = vmatpush1.bf16.msra.mxu0 0
        %239 = vmatprep.subr.bf16.mxu0 0
        %240 = vmatpush1.bf16.msra.mxu0 0
        %241 = vmatprep.subr.bf16.mxu0 0
        %242 = vmatpush1.bf16.msra.mxu0 0
        %243 = vmatprep.subr.bf16.mxu0 0
        %244 = vmatpush1.bf16.msra.mxu0 0
        %245 = vmatprep.subr.bf16.mxu0 0
        %246 = vmatpush1.bf16.msra.mxu0 0
        %247 = vmatprep.subr.bf16.mxu0 0
        %248 = vmatpush1.bf16.msra.mxu0 0
        %249 = vmatprep.subr.bf16.mxu0 0
        %250 = vmatpush1.bf16.msra.mxu0 0
        %251 = vmatprep.subr.bf16.mxu0 0
        %252 = vmatpush1.bf16.msra.mxu0 0
        %253 = vmatprep.mubr.bf16.mxu0 0
        %254 = vmatmul.mubr.bf16.gmra.mrb[0].mxu0 %v209
        %v255 = vpop.f32.mrb[0].mxu0
        %v256 = vadd.f32 0.0, %v255
        %v257 = vpop.f32.mrb[0].mxu0
        %v258 = vadd.f32 0.0, %v257
        %v259 = vpop.f32.mrb[0].mxu0
        %v260 = vadd.f32 0.0, %v259
        %v261 = vpop.f32.mrb[0].mxu0
        %v262 = vadd.f32 0.0, %v261
        %263 = vdwg.mxu0
        %264 = vmatprep.subr.bf16.mxu0 0
        %265 = vmatpush1.bf16.msra.mxu0 %v219
        %266 = vmatprep.subr.bf16.mxu0 0
        %267 = vmatpush1.bf16.msra.mxu0 0
        %268 = vmatprep.subr.bf16.mxu0 0
        %269 = vmatpush1.bf16.msra.mxu0 0
        %270 = vmatprep.subr.bf16.mxu0 0
        %271 = vmatpush1.bf16.msra.mxu0 0
        %272 = vmatprep.subr.bf16.mxu0 0
        %273 = vmatpush1.bf16.msra.mxu0 0
        %274 = vmatprep.subr.bf16.mxu0 0
        %275 = vmatpush1.bf16.msra.mxu0 0
        %276 = vmatprep.subr.bf16.mxu0 0
        %277 = vmatpush1.bf16.msra.mxu0 0
        %278 = vmatprep.subr.bf16.mxu0 0
        %279 = vmatpush1.bf16.msra.mxu0 0
        %280 = vmatprep.subr.bf16.mxu0 0
        %281 = vmatpush1.bf16.msra.mxu0 0
        %282 = vmatprep.subr.bf16.mxu0 0
        %283 = vmatpush1.bf16.msra.mxu0 0
        %284 = vmatprep.subr.bf16.mxu0 0
        %285 = vmatpush1.bf16.msra.mxu0 0
        %286 = vmatprep.subr.bf16.mxu0 0
        %287 = vmatpush1.bf16.msra.mxu0 0
        %288 = vmatprep.subr.bf16.mxu0 0
        %289 = vmatpush1.bf16.msra.mxu0 0
        %290 = vmatprep.subr.bf16.mxu0 0
        %291 = vmatpush1.bf16.msra.mxu0 0
        %292 = vmatprep.subr.bf16.mxu0 0
        %293 = vmatpush1.bf16.msra.mxu0 0
        %294 = vmatprep.subr.bf16.mxu0 0
        %295 = vmatpush1.bf16.msra.mxu0 0
        %296 = vmatprep.mubr.bf16.mxu0 0
        %297 = vmatmul.mubr.bf16.gmra.mrb[0].mxu0 %v209
        %v298 = vpop.f32.mrb[0].mxu0
        %v299 = vadd.f32 0.0, %v298
        %v300 = vpop.f32.mrb[0].mxu0
        %v301 = vpop.f32.mrb[0].mxu0
        %v302 = vadd.f32 0.0, %v301
        %v303 = vpop.f32.mrb[0].mxu0
        %304 = vdwg.mxu0
        %v307 = vunpack.c.l.b16 %v171
        %v308 = vunpack.c.l.b16 %v172
        %v309 = vpack.c.b16 %v308, %v307
        %v311 = vsel %vm207, %v309, 0
        %v314 = vsel %vm211, %v189, 0
        %v317 = vsel %vm211, %v197, 0
        %v320 = vsel %vm211, %v196, 0
        %322 = vmatprep.subr.bf16.mxu0 %v317
        %323 = vmatpush1.bf16.msra.mxu0 %v314
        %324 = vmatprep.subr.bf16.mxu0 0
        %325 = vmatpush1.bf16.msra.mxu0 0
        %326 = vmatprep.subr.bf16.mxu0 0
        %327 = vmatpush1.bf16.msra.mxu0 0
        %328 = vmatprep.subr.bf16.mxu0 0
        %329 = vmatpush1.bf16.msra.mxu0 0
        %330 = vmatprep.subr.bf16.mxu0 0
        %331 = vmatpush1.bf16.msra.mxu0 0
        %332 = vmatprep.subr.bf16.mxu0 0
        %333 = vmatpush1.bf16.msra.mxu0 0
        %334 = vmatprep.subr.bf16.mxu0 0
        %335 = vmatpush1.bf16.msra.mxu0 0
        %336 = vmatprep.subr.bf16.mxu0 0
        %337 = vmatpush1.bf16.msra.mxu0 0
        %338 = vmatprep.subr.bf16.mxu0 0
        %339 = vmatpush1.bf16.msra.mxu0 0
        %340 = vmatprep.subr.bf16.mxu0 0
        %341 = vmatpush1.bf16.msra.mxu0 0
        %342 = vmatprep.subr.bf16.mxu0 0
        %343 = vmatpush1.bf16.msra.mxu0 0
        %344 = vmatprep.subr.bf16.mxu0 0
        %345 = vmatpush1.bf16.msra.mxu0 0
        %346 = vmatprep.subr.bf16.mxu0 0
        %347 = vmatpush1.bf16.msra.mxu0 0
        %348 = vmatprep.subr.bf16.mxu0 0
        %349 = vmatpush1.bf16.msra.mxu0 0
        %350 = vmatprep.subr.bf16.mxu0 0
        %351 = vmatpush1.bf16.msra.mxu0 0
        %352 = vmatprep.subr.bf16.mxu0 0
        %353 = vmatpush1.bf16.msra.mxu0 0
        %354 = vmatprep.mubr.bf16.mxu0 0
        %355 = vmatmul.mubr.bf16.gmra.mrb[0].mxu0 %v311
        %v356 = vpop.f32.mrb[0].mxu0
        %v357 = vadd.f32 %v256, %v356
        %v358 = vpop.f32.mrb[0].mxu0
        %v359 = vadd.f32 %v258, %v358
        %v360 = vpop.f32.mrb[0].mxu0
        %v361 = vadd.f32 %v260, %v360
        %v362 = vpop.f32.mrb[0].mxu0
        %v363 = vadd.f32 %v262, %v362
        %364 = vdwg.mxu0
        %365 = vmatprep.subr.bf16.mxu0 0
        %366 = vmatpush1.bf16.msra.mxu0 %v320
        %367 = vmatprep.subr.bf16.mxu0 0
        %368 = vmatpush1.bf16.msra.mxu0 0
        %369 = vmatprep.subr.bf16.mxu0 0
        %370 = vmatpush1.bf16.msra.mxu0 0
        %371 = vmatprep.subr.bf16.mxu0 0
        %372 = vmatpush1.bf16.msra.mxu0 0
        %373 = vmatprep.subr.bf16.mxu0 0
        %374 = vmatpush1.bf16.msra.mxu0 0
        %375 = vmatprep.subr.bf16.mxu0 0
        %376 = vmatpush1.bf16.msra.mxu0 0
        %377 = vmatprep.subr.bf16.mxu0 0
        %378 = vmatpush1.bf16.msra.mxu0 0
        %379 = vmatprep.subr.bf16.mxu0 0
        %380 = vmatpush1.bf16.msra.mxu0 0
        %381 = vmatprep.subr.bf16.mxu0 0
        %382 = vmatpush1.bf16.msra.mxu0 0
        %383 = vmatprep.subr.bf16.mxu0 0
        %384 = vmatpush1.bf16.msra.mxu0 0
        %385 = vmatprep.subr.bf16.mxu0 0
        %386 = vmatpush1.bf16.msra.mxu0 0
        %387 = vmatprep.subr.bf16.mxu0 0
        %388 = vmatpush1.bf16.msra.mxu0 0
        %389 = vmatprep.subr.bf16.mxu0 0
        %390 = vmatpush1.bf16.msra.mxu0 0
        %391 = vmatprep.subr.bf16.mxu0 0
        %392 = vmatpush1.bf16.msra.mxu0 0
        %393 = vmatprep.subr.bf16.mxu0 0
        %394 = vmatpush1.bf16.msra.mxu0 0
        %395 = vmatprep.subr.bf16.mxu0 0
        %396 = vmatpush1.bf16.msra.mxu0 0
        %397 = vmatprep.mubr.bf16.mxu0 0
        %398 = vmatmul.mubr.bf16.gmra.mrb[0].mxu0 %v311
        %v399 = vpop.f32.mrb[0].mxu0
        %v400 = vadd.f32 %v299, %v399
        %v401 = vpop.f32.mrb[0].mxu0
        %v402 = vpop.f32.mrb[0].mxu0
        %v403 = vadd.f32 %v302, %v402
        %v404 = vpop.f32.mrb[0].mxu0
        %405 = vdwg.mxu0
        %v406 = vld [vmem:[%s168] sm:$0x3f]
        %s407 = scalar_lea.vmem %s1, 16
        %v408 = vld [vmem:[%s407] sm:$0xf]
        %v409 = vld [vmem:[%s407 + $0x4] sm:$0xf]
        %v412 = vunpack.c.l.b16 %v408
        %v413 = vunpack.c.l.b16 %v409
        %v414 = vpack.c.b16 %v413, %v412
        %v416 = vcombine.high %v406, %v406
        %v418 = vunpack.c.l.s4 1983009808
        %v419 = vunpack.c.0.s8 %v418
        %v420 = vlaneseq
        %v421 = vshrl.u32 %v420, 7
        %v422 = vsub.s32 %v419, %v421
        %v423 = vrot.slane %v406, %v422
        %v425 = vunpack.c.l.s4 1983009808
        %v426 = vunpack.c.0.s8 %v425
        %v427 = vlaneseq
        %v428 = vshrl.u32 %v427, 7
        %v429 = vsub.s32 %v426, %v428
        %v430 = vrot.slane %v416, %v429
        %v431 = vcombine.high %v423, %v423
        %432 = vrot.lane.b32.xlu0 %v423, 126
        %v433 = vpop.permute.xlu0 %432
        %434 = vrot.lane.b32.xlu0 %v431, 126
        %v435 = vpop.permute.xlu0 %434
        %436 = vrot.lane.b32.xlu0 %v430, 126
        %v437 = vpop.permute.xlu0 %436
        %vm438 = vcmask 1031168
        %v439 = vsel %vm438, %v433, %v435
        %v440 = vsel %vm438, %v435, %v437
        %v442 = vsel %vm207, %v414, 0
        %v445 = vsel %vm211, %v439, 0
        %v448 = vsel %vm211, %v440, 0
        %v451 = vsel %vm211, %v437, 0
        %453 = vmatprep.subr.bf16.mxu0 %v448
        %454 = vmatpush1.bf16.msra.mxu0 %v445
        %455 = vmatprep.subr.bf16.mxu0 0
        %456 = vmatpush1.bf16.msra.mxu0 0
        %457 = vmatprep.subr.bf16.mxu0 0
        %458 = vmatpush1.bf16.msra.mxu0 0
        %459 = vmatprep.subr.bf16.mxu0 0
        %460 = vmatpush1.bf16.msra.mxu0 0
        %461 = vmatprep.subr.bf16.mxu0 0
        %462 = vmatpush1.bf16.msra.mxu0 0
        %463 = vmatprep.subr.bf16.mxu0 0
        %464 = vmatpush1.bf16.msra.mxu0 0
        %465 = vmatprep.subr.bf16.mxu0 0
        %466 = vmatpush1.bf16.msra.mxu0 0
        %467 = vmatprep.subr.bf16.mxu0 0
        %468 = vmatpush1.bf16.msra.mxu0 0
        %469 = vmatprep.subr.bf16.mxu0 0
        %470 = vmatpush1.bf16.msra.mxu0 0
        %471 = vmatprep.subr.bf16.mxu0 0
        %472 = vmatpush1.bf16.msra.mxu0 0
        %473 = vmatprep.subr.bf16.mxu0 0
        %474 = vmatpush1.bf16.msra.mxu0 0
        %475 = vmatprep.subr.bf16.mxu0 0
        %476 = vmatpush1.bf16.msra.mxu0 0
        %477 = vmatprep.subr.bf16.mxu0 0
        %478 = vmatpush1.bf16.msra.mxu0 0
        %479 = vmatprep.subr.bf16.mxu0 0
        %480 = vmatpush1.bf16.msra.mxu0 0
        %481 = vmatprep.subr.bf16.mxu0 0
        %482 = vmatpush1.bf16.msra.mxu0 0
        %483 = vmatprep.subr.bf16.mxu0 0
        %484 = vmatpush1.bf16.msra.mxu0 0
        %485 = vmatprep.mubr.bf16.mxu0 0
        %486 = vmatmul.mubr.bf16.gmra.mrb[0].mxu0 %v442
        %v487 = vpop.f32.mrb[0].mxu0
        %v488 = vadd.f32 0.0, %v487
        %v489 = vpop.f32.mrb[0].mxu0
        %v490 = vadd.f32 0.0, %v489
        %v491 = vpop.f32.mrb[0].mxu0
        %v492 = vadd.f32 0.0, %v491
        %v493 = vpop.f32.mrb[0].mxu0
        %v494 = vadd.f32 0.0, %v493
        %495 = vdwg.mxu0
        %496 = vmatprep.subr.bf16.mxu0 0
        %497 = vmatpush1.bf16.msra.mxu0 %v451
        %498 = vmatprep.subr.bf16.mxu0 0
        %499 = vmatpush1.bf16.msra.mxu0 0
        %500 = vmatprep.subr.bf16.mxu0 0
        %501 = vmatpush1.bf16.msra.mxu0 0
        %502 = vmatprep.subr.bf16.mxu0 0
        %503 = vmatpush1.bf16.msra.mxu0 0
        %504 = vmatprep.subr.bf16.mxu0 0
        %505 = vmatpush1.bf16.msra.mxu0 0
        %506 = vmatprep.subr.bf16.mxu0 0
        %507 = vmatpush1.bf16.msra.mxu0 0
        %508 = vmatprep.subr.bf16.mxu0 0
        %509 = vmatpush1.bf16.msra.mxu0 0
        %510 = vmatprep.subr.bf16.mxu0 0
        %511 = vmatpush1.bf16.msra.mxu0 0
        %512 = vmatprep.subr.bf16.mxu0 0
        %513 = vmatpush1.bf16.msra.mxu0 0
        %514 = vmatprep.subr.bf16.mxu0 0
        %515 = vmatpush1.bf16.msra.mxu0 0
        %516 = vmatprep.subr.bf16.mxu0 0
        %517 = vmatpush1.bf16.msra.mxu0 0
        %518 = vmatprep.subr.bf16.mxu0 0
        %519 = vmatpush1.bf16.msra.mxu0 0
        %520 = vmatprep.subr.bf16.mxu0 0
        %521 = vmatpush1.bf16.msra.mxu0 0
        %522 = vmatprep.subr.bf16.mxu0 0
        %523 = vmatpush1.bf16.msra.mxu0 0
        %524 = vmatprep.subr.bf16.mxu0 0
        %525 = vmatpush1.bf16.msra.mxu0 0
        %526 = vmatprep.subr.bf16.mxu0 0
        %527 = vmatpush1.bf16.msra.mxu0 0
        %528 = vmatprep.mubr.bf16.mxu0 0
        %529 = vmatmul.mubr.bf16.gmra.mrb[0].mxu0 %v442
        %v530 = vpop.f32.mrb[0].mxu0
        %v531 = vadd.f32 0.0, %v530
        %v532 = vpop.f32.mrb[0].mxu0
        %v533 = vpop.f32.mrb[0].mxu0
        %v534 = vadd.f32 0.0, %v533
        %v535 = vpop.f32.mrb[0].mxu0
        %536 = vdwg.mxu0
        %v537 = vadd.f32 %v357, %v488
        %v538 = vadd.f32 %v359, %v490
        %v539 = vadd.f32 %v400, %v531
        %v540 = vadd.f32 %v361, %v492
        %v541 = vadd.f32 %v363, %v494
        %v542 = vadd.f32 %v403, %v534
        %v543 = vld [vmem:[%s168] sm:$0x3f]
        %s544 = scalar_lea.vmem %s1, 24
        %v545 = vld [vmem:[%s544] sm:$0xf]
        %v546 = vld [vmem:[%s544 + $0x4] sm:$0xf]
        %v549 = vunpack.c.l.b16 %v545
        %v550 = vunpack.c.l.b16 %v546
        %v551 = vpack.c.b16 %v550, %v549
        %v553 = vcombine.high %v543, %v543
        %v555 = vunpack.c.l.s4 1983009808
        %v556 = vunpack.c.0.s8 %v555
        %v557 = vlaneseq
        %v558 = vshrl.u32 %v557, 7
        %v559 = vsub.s32 %v556, %v558
        %v560 = vrot.slane %v543, %v559
        %v562 = vunpack.c.l.s4 1983009808
        %v563 = vunpack.c.0.s8 %v562
        %v564 = vlaneseq
        %v565 = vshrl.u32 %v564, 7
        %v566 = vsub.s32 %v563, %v565
        %v567 = vrot.slane %v553, %v566
        %v568 = vcombine.high %v560, %v560
        %569 = vrot.lane.b32.xlu0 %v560, 110
        %v570 = vpop.permute.xlu0 %569
        %571 = vrot.lane.b32.xlu0 %v568, 110
        %v572 = vpop.permute.xlu0 %571
        %573 = vrot.lane.b32.xlu0 %v567, 110
        %v574 = vpop.permute.xlu0 %573
        %vm575 = vcmask 900096
        %v576 = vsel %vm575, %v570, %v572
        %v577 = vsel %vm575, %v572, %v574
        %v579 = vsel %vm207, %v551, 0
        %v582 = vsel %vm211, %v576, 0
        %v585 = vsel %vm211, %v577, 0
        %v588 = vsel %vm211, %v574, 0
        %590 = vmatprep.subr.bf16.mxu0 %v585
        %591 = vmatpush1.bf16.msra.mxu0 %v582
        %592 = vmatprep.subr.bf16.mxu0 0
        %593 = vmatpush1.bf16.msra.mxu0 0
        %594 = vmatprep.subr.bf16.mxu0 0
        %595 = vmatpush1.bf16.msra.mxu0 0
        %596 = vmatprep.subr.bf16.mxu0 0
        %597 = vmatpush1.bf16.msra.mxu0 0
        %598 = vmatprep.subr.bf16.mxu0 0
        %599 = vmatpush1.bf16.msra.mxu0 0
        %600 = vmatprep.subr.bf16.mxu0 0
        %601 = vmatpush1.bf16.msra.mxu0 0
        %602 = vmatprep.subr.bf16.mxu0 0
        %603 = vmatpush1.bf16.msra.mxu0 0
        %604 = vmatprep.subr.bf16.mxu0 0
        %605 = vmatpush1.bf16.msra.mxu0 0
        %606 = vmatprep.subr.bf16.mxu0 0
        %607 = vmatpush1.bf16.msra.mxu0 0
        %608 = vmatprep.subr.bf16.mxu0 0
        %609 = vmatpush1.bf16.msra.mxu0 0
        %610 = vmatprep.subr.bf16.mxu0 0
        %611 = vmatpush1.bf16.msra.mxu0 0
        %612 = vmatprep.subr.bf16.mxu0 0
        %613 = vmatpush1.bf16.msra.mxu0 0
        %614 = vmatprep.subr.bf16.mxu0 0
        %615 = vmatpush1.bf16.msra.mxu0 0
        %616 = vmatprep.subr.bf16.mxu0 0
        %617 = vmatpush1.bf16.msra.mxu0 0
        %618 = vmatprep.subr.bf16.mxu0 0
        %619 = vmatpush1.bf16.msra.mxu0 0
        %620 = vmatprep.subr.bf16.mxu0 0
        %621 = vmatpush1.bf16.msra.mxu0 0
        %622 = vmatprep.mubr.bf16.mxu0 0
        %623 = vmatmul.mubr.bf16.gmra.mrb[0].mxu0 %v579
        %v624 = vpop.f32.mrb[0].mxu0
        %v625 = vadd.f32 0.0, %v624
        %v626 = vpop.f32.mrb[0].mxu0
        %v627 = vadd.f32 0.0, %v626
        %v628 = vpop.f32.mrb[0].mxu0
        %v629 = vadd.f32 0.0, %v628
        %v630 = vpop.f32.mrb[0].mxu0
        %v631 = vadd.f32 0.0, %v630
        %632 = vdwg.mxu0
        %633 = vmatprep.subr.bf16.mxu0 0
        %634 = vmatpush1.bf16.msra.mxu0 %v588
        %635 = vmatprep.subr.bf16.mxu0 0
        %636 = vmatpush1.bf16.msra.mxu0 0
        %637 = vmatprep.subr.bf16.mxu0 0
        %638 = vmatpush1.bf16.msra.mxu0 0
        %639 = vmatprep.subr.bf16.mxu0 0
        %640 = vmatpush1.bf16.msra.mxu0 0
        %641 = vmatprep.subr.bf16.mxu0 0
        %642 = vmatpush1.bf16.msra.mxu0 0
        %643 = vmatprep.subr.bf16.mxu0 0
        %644 = vmatpush1.bf16.msra.mxu0 0
        %645 = vmatprep.subr.bf16.mxu0 0
        %646 = vmatpush1.bf16.msra.mxu0 0
        %647 = vmatprep.subr.bf16.mxu0 0
        %648 = vmatpush1.bf16.msra.mxu0 0
        %649 = vmatprep.subr.bf16.mxu0 0
        %650 = vmatpush1.bf16.msra.mxu0 0
        %651 = vmatprep.subr.bf16.mxu0 0
        %652 = vmatpush1.bf16.msra.mxu0 0
        %653 = vmatprep.subr.bf16.mxu0 0
        %654 = vmatpush1.bf16.msra.mxu0 0
        %655 = vmatprep.subr.bf16.mxu0 0
        %656 = vmatpush1.bf16.msra.mxu0 0
        %657 = vmatprep.subr.bf16.mxu0 0
        %658 = vmatpush1.bf16.msra.mxu0 0
        %659 = vmatprep.subr.bf16.mxu0 0
        %660 = vmatpush1.bf16.msra.mxu0 0
        %661 = vmatprep.subr.bf16.mxu0 0
        %662 = vmatpush1.bf16.msra.mxu0 0
        %663 = vmatprep.subr.bf16.mxu0 0
        %664 = vmatpush1.bf16.msra.mxu0 0
        %665 = vmatprep.mubr.bf16.mxu0 0
        %666 = vmatmul.mubr.bf16.gmra.mrb[0].mxu0 %v579
        %v667 = vpop.f32.mrb[0].mxu0
        %v668 = vadd.f32 0.0, %v667
        %v669 = vpop.f32.mrb[0].mxu0
        %v670 = vpop.f32.mrb[0].mxu0
        %v671 = vadd.f32 0.0, %v670
        %v672 = vpop.f32.mrb[0].mxu0
        %673 = vdwg.mxu0
        %v674 = vadd.f32 %v537, %v625
        %v675 = vadd.f32 %v538, %v627
        %v676 = vadd.f32 %v539, %v668
        %v677 = vadd.f32 %v540, %v629
        %v678 = vadd.f32 %v541, %v631
        %v679 = vadd.f32 %v542, %v671
        %v680 = vld [vmem:[%s168] sm:$0x3f]
        %s681 = scalar_lea.vmem %s1, 32
        %v682 = vld [vmem:[%s681] sm:$0xf]
        %v683 = vld [vmem:[%s681 + $0x4] sm:$0xf]
        %v686 = vunpack.c.l.b16 %v682
        %v687 = vunpack.c.l.b16 %v683
        %v688 = vpack.c.b16 %v687, %v686
        %v690 = vcombine.high %v680, %v680
        %v692 = vunpack.c.l.s4 1983009808
        %v693 = vunpack.c.0.s8 %v692
        %v694 = vlaneseq
        %v695 = vshrl.u32 %v694, 7
        %v696 = vsub.s32 %v693, %v695
        %v697 = vrot.slane %v680, %v696
        %v699 = vunpack.c.l.s4 1983009808
        %v700 = vunpack.c.0.s8 %v699
        %v701 = vlaneseq
        %v702 = vshrl.u32 %v701, 7
        %v703 = vsub.s32 %v700, %v702
        %v704 = vrot.slane %v690, %v703
        %v705 = vcombine.high %v697, %v697
        %706 = vrot.lane.b32.xlu0 %v697, 109
        %v707 = vpop.permute.xlu0 %706
        %708 = vrot.lane.b32.xlu0 %v705, 109
        %v709 = vpop.permute.xlu0 %708
        %710 = vrot.lane.b32.xlu0 %v704, 109
        %v711 = vpop.permute.xlu0 %710
        %vm712 = vcmask 891904
        %v713 = vsel %vm712, %v707, %v709
        %v714 = vsel %vm712, %v709, %v711
        %v716 = vsel %vm207, %v688, 0
        %v719 = vsel %vm211, %v713, 0
        %v722 = vsel %vm211, %v714, 0
        %v725 = vsel %vm211, %v711, 0
        %727 = vmatprep.subr.bf16.mxu0 %v722
        %728 = vmatpush1.bf16.msra.mxu0 %v719
        %729 = vmatprep.subr.bf16.mxu0 0
        %730 = vmatpush1.bf16.msra.mxu0 0
        %731 = vmatprep.subr.bf16.mxu0 0
        %732 = vmatpush1.bf16.msra.mxu0 0
        %733 = vmatprep.subr.bf16.mxu0 0
        %734 = vmatpush1.bf16.msra.mxu0 0
        %735 = vmatprep.subr.bf16.mxu0 0
        %736 = vmatpush1.bf16.msra.mxu0 0
        %737 = vmatprep.subr.bf16.mxu0 0
        %738 = vmatpush1.bf16.msra.mxu0 0
        %739 = vmatprep.subr.bf16.mxu0 0
        %740 = vmatpush1.bf16.msra.mxu0 0
        %741 = vmatprep.subr.bf16.mxu0 0
        %742 = vmatpush1.bf16.msra.mxu0 0
        %743 = vmatprep.subr.bf16.mxu0 0
        %744 = vmatpush1.bf16.msra.mxu0 0
        %745 = vmatprep.subr.bf16.mxu0 0
        %746 = vmatpush1.bf16.msra.mxu0 0
        %747 = vmatprep.subr.bf16.mxu0 0
        %748 = vmatpush1.bf16.msra.mxu0 0
        %749 = vmatprep.subr.bf16.mxu0 0
        %750 = vmatpush1.bf16.msra.mxu0 0
        %751 = vmatprep.subr.bf16.mxu0 0
        %752 = vmatpush1.bf16.msra.mxu0 0
        %753 = vmatprep.subr.bf16.mxu0 0
        %754 = vmatpush1.bf16.msra.mxu0 0
        %755 = vmatprep.subr.bf16.mxu0 0
        %756 = vmatpush1.bf16.msra.mxu0 0
        %757 = vmatprep.subr.bf16.mxu0 0
        %758 = vmatpush1.bf16.msra.mxu0 0
        %759 = vmatprep.mubr.bf16.mxu0 0
        %760 = vmatmul.mubr.bf16.gmra.mrb[0].mxu0 %v716
        %v761 = vpop.f32.mrb[0].mxu0
        %v762 = vadd.f32 0.0, %v761
        %v763 = vpop.f32.mrb[0].mxu0
        %v764 = vadd.f32 0.0, %v763
        %v765 = vpop.f32.mrb[0].mxu0
        %v766 = vadd.f32 0.0, %v765
        %v767 = vpop.f32.mrb[0].mxu0
        %v768 = vadd.f32 0.0, %v767
        %769 = vdwg.mxu0
        %770 = vmatprep.subr.bf16.mxu0 0
        %771 = vmatpush1.bf16.msra.mxu0 %v725
        %772 = vmatprep.subr.bf16.mxu0 0
        %773 = vmatpush1.bf16.msra.mxu0 0
        %774 = vmatprep.subr.bf16.mxu0 0
        %775 = vmatpush1.bf16.msra.mxu0 0
        %776 = vmatprep.subr.bf16.mxu0 0
        %777 = vmatpush1.bf16.msra.mxu0 0
        %778 = vmatprep.subr.bf16.mxu0 0
        %779 = vmatpush1.bf16.msra.mxu0 0
        %780 = vmatprep.subr.bf16.mxu0 0
        %781 = vmatpush1.bf16.msra.mxu0 0
        %782 = vmatprep.subr.bf16.mxu0 0
        %783 = vmatpush1.bf16.msra.mxu0 0
        %784 = vmatprep.subr.bf16.mxu0 0
        %785 = vmatpush1.bf16.msra.mxu0 0
        %786 = vmatprep.subr.bf16.mxu0 0
        %787 = vmatpush1.bf16.msra.mxu0 0
        %788 = vmatprep.subr.bf16.mxu0 0
        %789 = vmatpush1.bf16.msra.mxu0 0
        %790 = vmatprep.subr.bf16.mxu0 0
        %791 = vmatpush1.bf16.msra.mxu0 0
        %792 = vmatprep.subr.bf16.mxu0 0
        %793 = vmatpush1.bf16.msra.mxu0 0
        %794 = vmatprep.subr.bf16.mxu0 0
        %795 = vmatpush1.bf16.msra.mxu0 0
        %796 = vmatprep.subr.bf16.mxu0 0
        %797 = vmatpush1.bf16.msra.mxu0 0
        %798 = vmatprep.subr.bf16.mxu0 0
        %799 = vmatpush1.bf16.msra.mxu0 0
        %800 = vmatprep.subr.bf16.mxu0 0
        %801 = vmatpush1.bf16.msra.mxu0 0
        %802 = vmatprep.mubr.bf16.mxu0 0
        %803 = vmatmul.mubr.bf16.gmra.mrb[0].mxu0 %v716
        %v804 = vpop.f32.mrb[0].mxu0
        %v805 = vadd.f32 0.0, %v804
        %v806 = vpop.f32.mrb[0].mxu0
        %v807 = vpop.f32.mrb[0].mxu0
        %v808 = vadd.f32 0.0, %v807
        %v809 = vpop.f32.mrb[0].mxu0
        %810 = vdwg.mxu0
        %v811 = vadd.f32 %v674, %v762
        %v812 = vadd.f32 %v675, %v764
        %v813 = vadd.f32 %v676, %v805
        %v814 = vadd.f32 %v677, %v766
        %v815 = vadd.f32 %v678, %v768
        %v816 = vadd.f32 %v679, %v808
        %v817 = vld [vmem:[%s168] sm:$0x3f]
        %s818 = scalar_lea.vmem %s1, 40
        %v819 = vld [vmem:[%s818] sm:$0xf]
        %v820 = vld [vmem:[%s818 + $0x4] sm:$0xf]
        %v823 = vunpack.c.l.b16 %v819
        %v824 = vunpack.c.l.b16 %v820
        %v825 = vpack.c.b16 %v824, %v823
        %v827 = vcombine.high %v817, %v817
        %v829 = vunpack.c.l.s4 1983009808
        %v830 = vunpack.c.0.s8 %v829
        %v831 = vlaneseq
        %v832 = vshrl.u32 %v831, 7
        %v833 = vsub.s32 %v830, %v832
        %v834 = vrot.slane %v817, %v833
        %v836 = vunpack.c.l.s4 1983009808
        %v837 = vunpack.c.0.s8 %v836
        %v838 = vlaneseq
        %v839 = vshrl.u32 %v838, 7
        %v840 = vsub.s32 %v837, %v839
        %v841 = vrot.slane %v827, %v840
        %v842 = vcombine.high %v834, %v834
        %843 = vrot.lane.b32.xlu0 %v834, 108
        %v844 = vpop.permute.xlu0 %843
        %845 = vrot.lane.b32.xlu0 %v842, 108
        %v846 = vpop.permute.xlu0 %845
        %847 = vrot.lane.b32.xlu0 %v841, 108
        %v848 = vpop.permute.xlu0 %847
        %vm849 = vcmask 883712
        %v850 = vsel %vm849, %v844, %v846
        %v851 = vsel %vm849, %v846, %v848
        %v853 = vsel %vm207, %v825, 0
        %v856 = vsel %vm211, %v850, 0
        %v859 = vsel %vm211, %v851, 0
        %v862 = vsel %vm211, %v848, 0
        %864 = vmatprep.subr.bf16.mxu0 %v859
        %865 = vmatpush1.bf16.msra.mxu0 %v856
        %866 = vmatprep.subr.bf16.mxu0 0
        %867 = vmatpush1.bf16.msra.mxu0 0
        %868 = vmatprep.subr.bf16.mxu0 0
        %869 = vmatpush1.bf16.msra.mxu0 0
        %870 = vmatprep.subr.bf16.mxu0 0
        %871 = vmatpush1.bf16.msra.mxu0 0
        %872 = vmatprep.subr.bf16.mxu0 0
        %873 = vmatpush1.bf16.msra.mxu0 0
        %874 = vmatprep.subr.bf16.mxu0 0
        %875 = vmatpush1.bf16.msra.mxu0 0
        %876 = vmatprep.subr.bf16.mxu0 0
        %877 = vmatpush1.bf16.msra.mxu0 0
        %878 = vmatprep.subr.bf16.mxu0 0
        %879 = vmatpush1.bf16.msra.mxu0 0
        %880 = vmatprep.subr.bf16.mxu0 0
        %881 = vmatpush1.bf16.msra.mxu0 0
        %882 = vmatprep.subr.bf16.mxu0 0
        %883 = vmatpush1.bf16.msra.mxu0 0
        %884 = vmatprep.subr.bf16.mxu0 0
        %885 = vmatpush1.bf16.msra.mxu0 0
        %886 = vmatprep.subr.bf16.mxu0 0
        %887 = vmatpush1.bf16.msra.mxu0 0
        %888 = vmatprep.subr.bf16.mxu0 0
        %889 = vmatpush1.bf16.msra.mxu0 0
        %890 = vmatprep.subr.bf16.mxu0 0
        %891 = vmatpush1.bf16.msra.mxu0 0
        %892 = vmatprep.subr.bf16.mxu0 0
        %893 = vmatpush1.bf16.msra.mxu0 0
        %894 = vmatprep.subr.bf16.mxu0 0
        %895 = vmatpush1.bf16.msra.mxu0 0
        %896 = vmatprep.mubr.bf16.mxu0 0
        %897 = vmatmul.mubr.bf16.gmra.mrb[0].mxu0 %v853
        %v898 = vpop.f32.mrb[0].mxu0
        %v899 = vadd.f32 0.0, %v898
        %v900 = vpop.f32.mrb[0].mxu0
        %v901 = vadd.f32 0.0, %v900
        %v902 = vpop.f32.mrb[0].mxu0
        %v903 = vadd.f32 0.0, %v902
        %v904 = vpop.f32.mrb[0].mxu0
        %v905 = vadd.f32 0.0, %v904
        %906 = vdwg.mxu0
        %907 = vmatprep.subr.bf16.mxu0 0
        %908 = vmatpush1.bf16.msra.mxu0 %v862
        %909 = vmatprep.subr.bf16.mxu0 0
        %910 = vmatpush1.bf16.msra.mxu0 0
        %911 = vmatprep.subr.bf16.mxu0 0
        %912 = vmatpush1.bf16.msra.mxu0 0
        %913 = vmatprep.subr.bf16.mxu0 0
        %914 = vmatpush1.bf16.msra.mxu0 0
        %915 = vmatprep.subr.bf16.mxu0 0
        %916 = vmatpush1.bf16.msra.mxu0 0
        %917 = vmatprep.subr.bf16.mxu0 0
        %918 = vmatpush1.bf16.msra.mxu0 0
        %919 = vmatprep.subr.bf16.mxu0 0
        %920 = vmatpush1.bf16.msra.mxu0 0
        %921 = vmatprep.subr.bf16.mxu0 0
        %922 = vmatpush1.bf16.msra.mxu0 0
        %923 = vmatprep.subr.bf16.mxu0 0
        %924 = vmatpush1.bf16.msra.mxu0 0
        %925 = vmatprep.subr.bf16.mxu0 0
        %926 = vmatpush1.bf16.msra.mxu0 0
        %927 = vmatprep.subr.bf16.mxu0 0
        %928 = vmatpush1.bf16.msra.mxu0 0
        %929 = vmatprep.subr.bf16.mxu0 0
        %930 = vmatpush1.bf16.msra.mxu0 0
        %931 = vmatprep.subr.bf16.mxu0 0
        %932 = vmatpush1.bf16.msra.mxu0 0
        %933 = vmatprep.subr.bf16.mxu0 0
        %934 = vmatpush1.bf16.msra.mxu0 0
        %935 = vmatprep.subr.bf16.mxu0 0
        %936 = vmatpush1.bf16.msra.mxu0 0
        %937 = vmatprep.subr.bf16.mxu0 0
        %938 = vmatpush1.bf16.msra.mxu0 0
        %939 = vmatprep.mubr.bf16.mxu0 0
        %940 = vmatmul.mubr.bf16.gmra.mrb[0].mxu0 %v853
        %v941 = vpop.f32.mrb[0].mxu0
        %v942 = vadd.f32 0.0, %v941
        %v943 = vpop.f32.mrb[0].mxu0
        %v944 = vpop.f32.mrb[0].mxu0
        %v945 = vadd.f32 0.0, %v944
        %v946 = vpop.f32.mrb[0].mxu0
        %947 = vdwg.mxu0
        %v948 = vadd.f32 %v811, %v899
        %v949 = vadd.f32 %v812, %v901
        %v950 = vadd.f32 %v813, %v942
        %v951 = vadd.f32 %v814, %v903
        %v952 = vadd.f32 %v815, %v905
        %v953 = vadd.f32 %v816, %v945
        %v954 = vld [vmem:[%s168] sm:$0x3f]
        %s955 = scalar_lea.vmem %s1, 48
        %v956 = vld [vmem:[%s955] sm:$0xf]
        %v957 = vld [vmem:[%s955 + $0x4] sm:$0xf]
        %v960 = vunpack.c.l.b16 %v956
        %v961 = vunpack.c.l.b16 %v957
        %v962 = vpack.c.b16 %v961, %v960
        %v964 = vcombine.high %v954, %v954
        %v966 = vunpack.c.l.s4 1983009808
        %v967 = vunpack.c.0.s8 %v966
        %v968 = vlaneseq
        %v969 = vshrl.u32 %v968, 7
        %v970 = vsub.s32 %v967, %v969
        %v971 = vrot.slane %v954, %v970
        %v973 = vunpack.c.l.s4 1983009808
        %v974 = vunpack.c.0.s8 %v973
        %v975 = vlaneseq
        %v976 = vshrl.u32 %v975, 7
        %v977 = vsub.s32 %v974, %v976
        %v978 = vrot.slane %v964, %v977
        %v979 = vcombine.high %v971, %v971
        %980 = vrot.lane.b32.xlu0 %v971, 92
        %v981 = vpop.permute.xlu0 %980
        %982 = vrot.lane.b32.xlu0 %v979, 92
        %v983 = vpop.permute.xlu0 %982
        %984 = vrot.lane.b32.xlu0 %v978, 92
        %v985 = vpop.permute.xlu0 %984
        %vm986 = vcmask 752640
        %v987 = vsel %vm986, %v981, %v983
        %v988 = vsel %vm986, %v983, %v985
        %v990 = vsel %vm207, %v962, 0
        %v993 = vsel %vm211, %v987, 0
        %v996 = vsel %vm211, %v988, 0
        %v999 = vsel %vm211, %v985, 0
        %1001 = vmatprep.subr.bf16.mxu0 %v996
        %1002 = vmatpush1.bf16.msra.mxu0 %v993
        %1003 = vmatprep.subr.bf16.mxu0 0
        %1004 = vmatpush1.bf16.msra.mxu0 0
        %1005 = vmatprep.subr.bf16.mxu0 0
        %1006 = vmatpush1.bf16.msra.mxu0 0
        %1007 = vmatprep.subr.bf16.mxu0 0
        %1008 = vmatpush1.bf16.msra.mxu0 0
        %1009 = vmatprep.subr.bf16.mxu0 0
        %1010 = vmatpush1.bf16.msra.mxu0 0
        %1011 = vmatprep.subr.bf16.mxu0 0
        %1012 = vmatpush1.bf16.msra.mxu0 0
        %1013 = vmatprep.subr.bf16.mxu0 0
        %1014 = vmatpush1.bf16.msra.mxu0 0
        %1015 = vmatprep.subr.bf16.mxu0 0
        %1016 = vmatpush1.bf16.msra.mxu0 0
        %1017 = vmatprep.subr.bf16.mxu0 0
        %1018 = vmatpush1.bf16.msra.mxu0 0
        %1019 = vmatprep.subr.bf16.mxu0 0
        %1020 = vmatpush1.bf16.msra.mxu0 0
        %1021 = vmatprep.subr.bf16.mxu0 0
        %1022 = vmatpush1.bf16.msra.mxu0 0
        %1023 = vmatprep.subr.bf16.mxu0 0
        %1024 = vmatpush1.bf16.msra.mxu0 0
        %1025 = vmatprep.subr.bf16.mxu0 0
        %1026 = vmatpush1.bf16.msra.mxu0 0
        %1027 = vmatprep.subr.bf16.mxu0 0
        %1028 = vmatpush1.bf16.msra.mxu0 0
        %1029 = vmatprep.subr.bf16.mxu0 0
        %1030 = vmatpush1.bf16.msra.mxu0 0
        %1031 = vmatprep.subr.bf16.mxu0 0
        %1032 = vmatpush1.bf16.msra.mxu0 0
        %1033 = vmatprep.mubr.bf16.mxu0 0
        %1034 = vmatmul.mubr.bf16.gmra.mrb[0].mxu0 %v990
        %v1035 = vpop.f32.mrb[0].mxu0
        %v1036 = vadd.f32 0.0, %v1035
        %v1037 = vpop.f32.mrb[0].mxu0
        %v1038 = vadd.f32 0.0, %v1037
        %v1039 = vpop.f32.mrb[0].mxu0
        %v1040 = vadd.f32 0.0, %v1039
        %v1041 = vpop.f32.mrb[0].mxu0
        %v1042 = vadd.f32 0.0, %v1041
        %1043 = vdwg.mxu0
        %1044 = vmatprep.subr.bf16.mxu0 0
        %1045 = vmatpush1.bf16.msra.mxu0 %v999
        %1046 = vmatprep.subr.bf16.mxu0 0
        %1047 = vmatpush1.bf16.msra.mxu0 0
        %1048 = vmatprep.subr.bf16.mxu0 0
        %1049 = vmatpush1.bf16.msra.mxu0 0
        %1050 = vmatprep.subr.bf16.mxu0 0
        %1051 = vmatpush1.bf16.msra.mxu0 0
        %1052 = vmatprep.subr.bf16.mxu0 0
        %1053 = vmatpush1.bf16.msra.mxu0 0
        %1054 = vmatprep.subr.bf16.mxu0 0
        %1055 = vmatpush1.bf16.msra.mxu0 0
        %1056 = vmatprep.subr.bf16.mxu0 0
        %1057 = vmatpush1.bf16.msra.mxu0 0
        %1058 = vmatprep.subr.bf16.mxu0 0
        %1059 = vmatpush1.bf16.msra.mxu0 0
        %1060 = vmatprep.subr.bf16.mxu0 0
        %1061 = vmatpush1.bf16.msra.mxu0 0
        %1062 = vmatprep.subr.bf16.mxu0 0
        %1063 = vmatpush1.bf16.msra.mxu0 0
        %1064 = vmatprep.subr.bf16.mxu0 0
        %1065 = vmatpush1.bf16.msra.mxu0 0
        %1066 = vmatprep.subr.bf16.mxu0 0
        %1067 = vmatpush1.bf16.msra.mxu0 0
        %1068 = vmatprep.subr.bf16.mxu0 0
        %1069 = vmatpush1.bf16.msra.mxu0 0
        %1070 = vmatprep.subr.bf16.mxu0 0
        %1071 = vmatpush1.bf16.msra.mxu0 0
        %1072 = vmatprep.subr.bf16.mxu0 0
        %1073 = vmatpush1.bf16.msra.mxu0 0
        %1074 = vmatprep.subr.bf16.mxu0 0
        %1075 = vmatpush1.bf16.msra.mxu0 0
        %1076 = vmatprep.mubr.bf16.mxu0 0
        %1077 = vmatmul.mubr.bf16.gmra.mrb[0].mxu0 %v990
        %v1078 = vpop.f32.mrb[0].mxu0
        %v1079 = vadd.f32 0.0, %v1078
        %v1080 = vpop.f32.mrb[0].mxu0
        %v1081 = vpop.f32.mrb[0].mxu0
        %v1082 = vadd.f32 0.0, %v1081
        %v1083 = vpop.f32.mrb[0].mxu0
        %1084 = vdwg.mxu0
        %v1085 = vadd.f32 %v948, %v1036
        %v1086 = vadd.f32 %v949, %v1038
        %v1087 = vadd.f32 %v950, %v1079
        %v1088 = vadd.f32 %v951, %v1040
        %v1089 = vadd.f32 %v952, %v1042
        %v1090 = vadd.f32 %v953, %v1082
        %v1091 = vld [vmem:[%s168] sm:$0x3f]
        %s1092 = scalar_lea.vmem %s1, 56
        %v1093 = vld [vmem:[%s1092] sm:$0xf]
        %v1094 = vld [vmem:[%s1092 + $0x4] sm:$0xf]
        %v1097 = vunpack.c.l.b16 %v1093
        %v1098 = vunpack.c.l.b16 %v1094
        %v1099 = vpack.c.b16 %v1098, %v1097
        %v1101 = vcombine.high %v1091, %v1091
        %v1103 = vunpack.c.l.s4 1983009808
        %v1104 = vunpack.c.0.s8 %v1103
        %v1105 = vlaneseq
        %v1106 = vshrl.u32 %v1105, 7
        %v1107 = vsub.s32 %v1104, %v1106
        %v1108 = vrot.slane %v1091, %v1107
        %v1110 = vunpack.c.l.s4 1983009808
        %v1111 = vunpack.c.0.s8 %v1110
        %v1112 = vlaneseq
        %v1113 = vshrl.u32 %v1112, 7
        %v1114 = vsub.s32 %v1111, %v1113
        %v1115 = vrot.slane %v1101, %v1114
        %v1116 = vcombine.high %v1108, %v1108
        %1117 = vrot.lane.b32.xlu0 %v1108, 91
        %v1118 = vpop.permute.xlu0 %1117
        %1119 = vrot.lane.b32.xlu0 %v1116, 91
        %v1120 = vpop.permute.xlu0 %1119
        %1121 = vrot.lane.b32.xlu0 %v1115, 91
        %v1122 = vpop.permute.xlu0 %1121
        %vm1123 = vcmask 744448
        %v1124 = vsel %vm1123, %v1118, %v1120
        %v1125 = vsel %vm1123, %v1120, %v1122
        %v1127 = vsel %vm207, %v1099, 0
        %v1130 = vsel %vm211, %v1124, 0
        %v1133 = vsel %vm211, %v1125, 0
        %v1136 = vsel %vm211, %v1122, 0
        %1138 = vmatprep.subr.bf16.mxu0 %v1133
        %1139 = vmatpush1.bf16.msra.mxu0 %v1130
        %1140 = vmatprep.subr.bf16.mxu0 0
        %1141 = vmatpush1.bf16.msra.mxu0 0
        %1142 = vmatprep.subr.bf16.mxu0 0
        %1143 = vmatpush1.bf16.msra.mxu0 0
        %1144 = vmatprep.subr.bf16.mxu0 0
        %1145 = vmatpush1.bf16.msra.mxu0 0
        %1146 = vmatprep.subr.bf16.mxu0 0
        %1147 = vmatpush1.bf16.msra.mxu0 0
        %1148 = vmatprep.subr.bf16.mxu0 0
        %1149 = vmatpush1.bf16.msra.mxu0 0
        %1150 = vmatprep.subr.bf16.mxu0 0
        %1151 = vmatpush1.bf16.msra.mxu0 0
        %1152 = vmatprep.subr.bf16.mxu0 0
        %1153 = vmatpush1.bf16.msra.mxu0 0
        %1154 = vmatprep.subr.bf16.mxu0 0
        %1155 = vmatpush1.bf16.msra.mxu0 0
        %1156 = vmatprep.subr.bf16.mxu0 0
        %1157 = vmatpush1.bf16.msra.mxu0 0
        %1158 = vmatprep.subr.bf16.mxu0 0
        %1159 = vmatpush1.bf16.msra.mxu0 0
        %1160 = vmatprep.subr.bf16.mxu0 0
        %1161 = vmatpush1.bf16.msra.mxu0 0
        %1162 = vmatprep.subr.bf16.mxu0 0
        %1163 = vmatpush1.bf16.msra.mxu0 0
        %1164 = vmatprep.subr.bf16.mxu0 0
        %1165 = vmatpush1.bf16.msra.mxu0 0
        %1166 = vmatprep.subr.bf16.mxu0 0
        %1167 = vmatpush1.bf16.msra.mxu0 0
        %1168 = vmatprep.subr.bf16.mxu0 0
        %1169 = vmatpush1.bf16.msra.mxu0 0
        %1170 = vmatprep.mubr.bf16.mxu0 0
        %1171 = vmatmul.mubr.bf16.gmra.mrb[0].mxu0 %v1127
        %v1172 = vpop.f32.mrb[0].mxu0
        %v1173 = vadd.f32 0.0, %v1172
        %v1174 = vpop.f32.mrb[0].mxu0
        %v1175 = vadd.f32 0.0, %v1174
        %v1176 = vpop.f32.mrb[0].mxu0
        %v1177 = vadd.f32 0.0, %v1176
        %v1178 = vpop.f32.mrb[0].mxu0
        %v1179 = vadd.f32 0.0, %v1178
        %1180 = vdwg.mxu0
        %1181 = vmatprep.subr.bf16.mxu0 0
        %1182 = vmatpush1.bf16.msra.mxu0 %v1136
        %1183 = vmatprep.subr.bf16.mxu0 0
        %1184 = vmatpush1.bf16.msra.mxu0 0
        %1185 = vmatprep.subr.bf16.mxu0 0
        %1186 = vmatpush1.bf16.msra.mxu0 0
        %1187 = vmatprep.subr.bf16.mxu0 0
        %1188 = vmatpush1.bf16.msra.mxu0 0
        %1189 = vmatprep.subr.bf16.mxu0 0
        %1190 = vmatpush1.bf16.msra.mxu0 0
        %1191 = vmatprep.subr.bf16.mxu0 0
        %1192 = vmatpush1.bf16.msra.mxu0 0
        %1193 = vmatprep.subr.bf16.mxu0 0
        %1194 = vmatpush1.bf16.msra.mxu0 0
        %1195 = vmatprep.subr.bf16.mxu0 0
        %1196 = vmatpush1.bf16.msra.mxu0 0
        %1197 = vmatprep.subr.bf16.mxu0 0
        %1198 = vmatpush1.bf16.msra.mxu0 0
        %1199 = vmatprep.subr.bf16.mxu0 0
        %1200 = vmatpush1.bf16.msra.mxu0 0
        %1201 = vmatprep.subr.bf16.mxu0 0
        %1202 = vmatpush1.bf16.msra.mxu0 0
        %1203 = vmatprep.subr.bf16.mxu0 0
        %1204 = vmatpush1.bf16.msra.mxu0 0
        %1205 = vmatprep.subr.bf16.mxu0 0
        %1206 = vmatpush1.bf16.msra.mxu0 0
        %1207 = vmatprep.subr.bf16.mxu0 0
        %1208 = vmatpush1.bf16.msra.mxu0 0
        %1209 = vmatprep.subr.bf16.mxu0 0
        %1210 = vmatpush1.bf16.msra.mxu0 0
        %1211 = vmatprep.subr.bf16.mxu0 0
        %1212 = vmatpush1.bf16.msra.mxu0 0
        %1213 = vmatprep.mubr.bf16.mxu0 0
        %1214 = vmatmul.mubr.bf16.gmra.mrb[0].mxu0 %v1127
        %v1215 = vpop.f32.mrb[0].mxu0
        %v1216 = vadd.f32 0.0, %v1215
        %v1217 = vpop.f32.mrb[0].mxu0
        %v1218 = vpop.f32.mrb[0].mxu0
        %v1219 = vadd.f32 0.0, %v1218
        %v1220 = vpop.f32.mrb[0].mxu0
        %1221 = vdwg.mxu0
        %v1222 = vadd.f32 %v1085, %v1173
        %v1223 = vadd.f32 %v1086, %v1175
        %v1224 = vadd.f32 %v1087, %v1216
        %v1225 = vadd.f32 %v1088, %v1177
        %v1226 = vadd.f32 %v1089, %v1179
        %v1227 = vadd.f32 %v1090, %v1219
        %v1228 = vld [vmem:[%s168] sm:$0x3f]
        %s1229 = scalar_lea.vmem %s1, 64
        %v1230 = vld [vmem:[%s1229] sm:$0xf]
        %v1231 = vld [vmem:[%s1229 + $0x4] sm:$0xf]
        %v1234 = vunpack.c.l.b16 %v1230
        %v1235 = vunpack.c.l.b16 %v1231
        %v1236 = vpack.c.b16 %v1235, %v1234
        %v1238 = vcombine.high %v1228, %v1228
        %v1240 = vunpack.c.l.s4 1983009808
        %v1241 = vunpack.c.0.s8 %v1240
        %v1242 = vlaneseq
        %v1243 = vshrl.u32 %v1242, 7
        %v1244 = vsub.s32 %v1241, %v1243
        %v1245 = vrot.slane %v1228, %v1244
        %v1247 = vunpack.c.l.s4 1983009808
        %v1248 = vunpack.c.0.s8 %v1247
        %v1249 = vlaneseq
        %v1250 = vshrl.u32 %v1249, 7
        %v1251 = vsub.s32 %v1248, %v1250
        %v1252 = vrot.slane %v1238, %v1251
        %v1253 = vcombine.high %v1245, %v1245
        %1254 = vrot.lane.b32.xlu0 %v1245, 90
        %v1255 = vpop.permute.xlu0 %1254
        %1256 = vrot.lane.b32.xlu0 %v1253, 90
        %v1257 = vpop.permute.xlu0 %1256
        %1258 = vrot.lane.b32.xlu0 %v1252, 90
        %v1259 = vpop.permute.xlu0 %1258
        %vm1260 = vcmask 736256
        %v1261 = vsel %vm1260, %v1255, %v1257
        %v1262 = vsel %vm1260, %v1257, %v1259
        %v1264 = vsel %vm207, %v1236, 0
        %v1267 = vsel %vm211, %v1261, 0
        %v1270 = vsel %vm211, %v1262, 0
        %v1273 = vsel %vm211, %v1259, 0
        %1275 = vmatprep.subr.bf16.mxu0 %v1270
        %1276 = vmatpush1.bf16.msra.mxu0 %v1267
        %1277 = vmatprep.subr.bf16.mxu0 0
        %1278 = vmatpush1.bf16.msra.mxu0 0
        %1279 = vmatprep.subr.bf16.mxu0 0
        %1280 = vmatpush1.bf16.msra.mxu0 0
        %1281 = vmatprep.subr.bf16.mxu0 0
        %1282 = vmatpush1.bf16.msra.mxu0 0
        %1283 = vmatprep.subr.bf16.mxu0 0
        %1284 = vmatpush1.bf16.msra.mxu0 0
        %1285 = vmatprep.subr.bf16.mxu0 0
        %1286 = vmatpush1.bf16.msra.mxu0 0
        %1287 = vmatprep.subr.bf16.mxu0 0
        %1288 = vmatpush1.bf16.msra.mxu0 0
        %1289 = vmatprep.subr.bf16.mxu0 0
        %1290 = vmatpush1.bf16.msra.mxu0 0
        %1291 = vmatprep.subr.bf16.mxu0 0
        %1292 = vmatpush1.bf16.msra.mxu0 0
        %1293 = vmatprep.subr.bf16.mxu0 0
        %1294 = vmatpush1.bf16.msra.mxu0 0
        %1295 = vmatprep.subr.bf16.mxu0 0
        %1296 = vmatpush1.bf16.msra.mxu0 0
        %1297 = vmatprep.subr.bf16.mxu0 0
        %1298 = vmatpush1.bf16.msra.mxu0 0
        %1299 = vmatprep.subr.bf16.mxu0 0
        %1300 = vmatpush1.bf16.msra.mxu0 0
        %1301 = vmatprep.subr.bf16.mxu0 0
        %1302 = vmatpush1.bf16.msra.mxu0 0
        %1303 = vmatprep.subr.bf16.mxu0 0
        %1304 = vmatpush1.bf16.msra.mxu0 0
        %1305 = vmatprep.subr.bf16.mxu0 0
        %1306 = vmatpush1.bf16.msra.mxu0 0
        %1307 = vmatprep.mubr.bf16.mxu0 0
        %1308 = vmatmul.mubr.bf16.gmra.mrb[0].mxu0 %v1264
        %v1309 = vpop.f32.mrb[0].mxu0
        %v1310 = vadd.f32 0.0, %v1309
        %v1311 = vpop.f32.mrb[0].mxu0
        %v1312 = vadd.f32 0.0, %v1311
        %v1313 = vpop.f32.mrb[0].mxu0
        %v1314 = vadd.f32 0.0, %v1313
        %v1315 = vpop.f32.mrb[0].mxu0
        %v1316 = vadd.f32 0.0, %v1315
        %1317 = vdwg.mxu0
        %1318 = vmatprep.subr.bf16.mxu0 0
        %1319 = vmatpush1.bf16.msra.mxu0 %v1273
        %1320 = vmatprep.subr.bf16.mxu0 0
        %1321 = vmatpush1.bf16.msra.mxu0 0
        %1322 = vmatprep.subr.bf16.mxu0 0
        %1323 = vmatpush1.bf16.msra.mxu0 0
        %1324 = vmatprep.subr.bf16.mxu0 0
        %1325 = vmatpush1.bf16.msra.mxu0 0
        %1326 = vmatprep.subr.bf16.mxu0 0
        %1327 = vmatpush1.bf16.msra.mxu0 0
        %1328 = vmatprep.subr.bf16.mxu0 0
        %1329 = vmatpush1.bf16.msra.mxu0 0
        %1330 = vmatprep.subr.bf16.mxu0 0
        %1331 = vmatpush1.bf16.msra.mxu0 0
        %1332 = vmatprep.subr.bf16.mxu0 0
        %1333 = vmatpush1.bf16.msra.mxu0 0
        %1334 = vmatprep.subr.bf16.mxu0 0
        %1335 = vmatpush1.bf16.msra.mxu0 0
        %1336 = vmatprep.subr.bf16.mxu0 0
        %1337 = vmatpush1.bf16.msra.mxu0 0
        %1338 = vmatprep.subr.bf16.mxu0 0
        %1339 = vmatpush1.bf16.msra.mxu0 0
        %1340 = vmatprep.subr.bf16.mxu0 0
        %1341 = vmatpush1.bf16.msra.mxu0 0
        %1342 = vmatprep.subr.bf16.mxu0 0
        %1343 = vmatpush1.bf16.msra.mxu0 0
        %1344 = vmatprep.subr.bf16.mxu0 0
        %1345 = vmatpush1.bf16.msra.mxu0 0
        %1346 = vmatprep.subr.bf16.mxu0 0
        %1347 = vmatpush1.bf16.msra.mxu0 0
        %1348 = vmatprep.subr.bf16.mxu0 0
        %1349 = vmatpush1.bf16.msra.mxu0 0
        %1350 = vmatprep.mubr.bf16.mxu0 0
        %1351 = vmatmul.mubr.bf16.gmra.mrb[0].mxu0 %v1264
        %v1352 = vpop.f32.mrb[0].mxu0
        %v1353 = vadd.f32 0.0, %v1352
        %v1354 = vpop.f32.mrb[0].mxu0
        %v1355 = vpop.f32.mrb[0].mxu0
        %v1356 = vadd.f32 0.0, %v1355
        %v1357 = vpop.f32.mrb[0].mxu0
        %1358 = vdwg.mxu0
        %v1359 = vadd.f32 %v1222, %v1310
        %v1360 = vadd.f32 %v1223, %v1312
        %v1361 = vadd.f32 %v1224, %v1353
        %v1362 = vadd.f32 %v1225, %v1314
        %v1363 = vadd.f32 %v1226, %v1316
        %v1364 = vadd.f32 %v1227, %v1356
        %v1365 = vld [vmem:[%s2] sm:$0xff]
        %v1366 = vld [vmem:[%s2 + $0x8] sm:$0xff]
        %1368 = vset.pattern.permute.xlu0 0
        %1369 = vperm.xlu0 %1368, %v1365
        %v1370 = vpop.permute.xlu0 %1369
        %1373 = vset.pattern.permute.xlu0 0
        %1374 = vperm.xlu0 %1373, %v1366
        %v1375 = vpop.permute.xlu0 %1374
        %v1377 = vadd.f32 %v1359, %v1370
        %v1378 = vadd.f32 %v1360, %v1370
        %v1379 = vadd.f32 %v1361, %v1370
        %v1380 = vadd.f32 %v1362, %v1375
        %v1381 = vadd.f32 %v1363, %v1375
        %v1382 = vadd.f32 %v1364, %v1375
        %v1383 = vmax.f32 %v1377, 0.0
        %v1384 = vmax.f32 %v1378, 0.0
        %v1385 = vmax.f32 %v1379, 0.0
        %v1386 = vmax.f32 %v1380, 0.0
        %v1387 = vmax.f32 %v1381, 0.0
        %v1388 = vmax.f32 %v1382, 0.0
        %1389 = vst [vmem:[%s163] sm:$0xff] %v1383
        %1390 = vst [vmem:[%s163 + $0x8] sm:$0xff] %v1384
        %vm1391 = vcmask 261120
        %1392 = vst.msk [vmem:[%s163 + $0x10] sm:$0xff] %vm1391, %v1385
        %1393 = vst [vmem:[%s163 + $0x18] sm:$0xff] %v1386
        %1394 = vst [vmem:[%s163 + $0x20] sm:$0xff] %v1387
        %1395 = vst.msk [vmem:[%s163 + $0x28] sm:$0xff] %vm1391, %v1388
        %s1396 = sand.u32 %s93, 1
        %s1397 = scalar_lea.sflag [#allocation3], %s1396
        %s1398 = sand.u32 %s93, 1
        %s1399 = smul.addr %s1398, 48
        %s1400 = scalar_lea.vmem [#allocation2], %s1399
        // Predicated region
        $region33: #{tpu_custom_call.1} parent=31 // pred_check
          %p1401 = pneg %p103
        $region34: #{tpu_custom_call.1} parent=31 // pred_check_branch
          %1403 = sbr.rel (%p1401) target = $region36
        $region35: #{tpu_custom_call.1} parent=31 // pred_region
          %s1405 = ssub.s32 768, 768
          %1406 = vsyncadd %s1397, %s1405
          %s1407 = smul.addr %s17, 6
          %s1408 = smul.addr %s1407, 128
          %s1409 = scalar_lea.hbm %s3, %s1408
          %s1410 = sshll.u32 %s1400, 4
          %s1411 = int_to_ptr.vmem [resolvable:$true] %s1410
          %1416 = dma.vmem_to_hbm [thread:$0]  %s1411, 768, %s1409, %s1397, 384, 384, 24
        $region36: #{tpu_custom_call.1} parent=31 // pred_fallthru
          _
      $region32: #{tpu_custom_call.1} parent=5 // pred_fallthru
        _
      %p1417 = scmp.le.s32.totalorder 2, %s12
      // Predicated region
      $region37: #{tpu_custom_call.1} parent=5 // pred_check
        %p1418 = pneg %p1417
      $region38: #{tpu_custom_call.1} parent=5 // pred_check_branch
        %1420 = sbr.rel (%p1418) target = $region40
      $region39: #{tpu_custom_call.1} parent=5 // pred_region
        %s1421 = ssub.s32 %s12, 2
        // Predicated region
        $region41: #{tpu_custom_call.1} parent=39 // pred_check
          %p1422 = pneg %p109
        $region42: #{tpu_custom_call.1} parent=39 // pred_check_branch
          %1424 = sbr.rel (%p1422) target = $region44
        $region43: #{tpu_custom_call.1} parent=39 // pred_region
          %s1425 = sand.u32 %s94, 1
          %s1426 = scalar_lea.sflag [#allocation3], %s1425
          %s1427 = sand.u32 %s94, 1
          %s1428 = smul.addr %s1427, 48
          %s1429 = scalar_lea.vmem [#allocation2], %s1428
          %1430 = dma.done %s1426, 768
        $region44: #{tpu_custom_call.1} parent=39 // pred_fallthru
          _
      $region40: #{tpu_custom_call.1} parent=5 // pred_fallthru
        _
    $region6: #{tpu_custom_call.1} parent=1 // loop_footer
      %s16 = sadd.s32 1, %s12
    $region7: #{tpu_custom_call.1} parent=1 // loop_footer_branch
      %11 = sbr.rel target = $region3
    $region8: #{tpu_custom_call.1} parent=1 // loop_exit
      _
    %1431 = vsyncpa [#allocation3], 1
    %s1432 = scalar_lea.sflag [#allocation3], 1
    %1433 = vsyncpa %s1432, 1

</llo_original>
